<compile_context>
chip_gen: v5e
topology: v5e:2x2
jax: 0.10.0
libtpu: 0.0.40
codegen_flags: <defaults>
</compile_context>

<pallas_src>
import math
import functools

import jax
import jax.numpy as jnp
from jax.experimental import pallas as pl
from jax.experimental.pallas import tpu as pltpu

CONFIG = dict(
    hidden_size=32,
    num_attention_heads=4,
    intermediate_size=64,
    layer_norm_eps=1e-12,      # transformers.BertConfig default
)
HEAD_SIZE = CONFIG['hidden_size'] // CONFIG['num_attention_heads']     # 8


# ---------------- shared math helpers (usable in-kernel and host-side) ----------------
def _ln_k(x, g, b, eps):
    mu = jnp.mean(x, axis=-1, keepdims=True)
    var = jnp.mean((x - mu) ** 2, axis=-1, keepdims=True)
    return (x - mu) * jax.lax.rsqrt(var + eps) * g + b


def _gelu_k(x):
    # TODO(synk): hidden_act of the real BertConfig unknown; tanh-approx GELU used.
    c = math.sqrt(2.0 / math.pi)
    return 0.5 * x * (1.0 + jnp.tanh(c * (x + 0.044715 * x * x * x)))


# ---------------- Pallas kernel: graph-biased BertLayer ----------------
def bert_layer_kernel(bt, n, nh, hd, eps,
                      hid_ref, edge_ref, bias_ref,
                      wqkv_ref, bqkv_ref, wao_ref, bao_ref, ln1g_ref, ln1b_ref,
                      wi_ref, bi_ref, wo_ref, bo_ref, ln2g_ref, ln2b_ref,
                      out_ref):
    H = nh * hd
    rows = bt * n

    x2 = hid_ref[...]                                   # (bt*n, H) bf16, token-major
    x32 = x2.astype(jnp.float32)                        # f32 copy for residual / LN

    # Fused QKV projection: one (rows, H) @ (H, 3H) bf16 MXU matmul; 1/sqrt(hd) is already
    # folded into the Q columns of wqkv / bqkv (scales both QK^T and Q.edge terms).
    qkv = jnp.dot(x2, wqkv_ref[...], preferred_element_type=jnp.float32) + bqkv_ref[...]

    # Head split once per block (nh lane slices + one stack per tensor; no per-batch unroll).
    q_h = [qkv[:, h * hd:(h + 1) * hd] for h in range(nh)]
    k_h = [qkv[:, H + h * hd:H + (h + 1) * hd] for h in range(nh)]
    v_h = [qkv[:, 2 * H + h * hd:2 * H + (h + 1) * hd] for h in range(nh)]

    def to_bh(parts):                                   # -> (bt*nh, n, hd), batch = (batch, head)
        return jnp.stack([p.reshape(bt, n, hd) for p in parts],
                         axis=1).reshape(bt * nh, n, hd).astype(jnp.bfloat16)

    q_bh, k_bh, v_bh = to_bh(q_h), to_bh(k_h), to_bh(v_h)
    q_bn = jnp.stack(q_h, axis=1).astype(jnp.bfloat16)  # (rows, nh, hd), batch = (batch, query)

    edge = edge_ref[...]                                # (rows, hd, n) bf16, lane-dense last dim

    # Scores: both terms as leading-batch MXU dots (no VPU broadcast/reduce, no f32 edge copy).
    s_qk = jnp.einsum('bnd,bmd->bnm', q_bh, k_bh,
                      preferred_element_type=jnp.float32)          # (bt*nh, n, n)
    s_ed = jnp.einsum('bhd,bdm->bhm', q_bn, edge,
                      preferred_element_type=jnp.float32)          # (rows, nh, n)
    s_ed = jnp.stack([s_ed[:, h, :].reshape(bt, n, n) for h in range(nh)],
                     axis=1)                                        # (bt, nh, n, n)
    s = s_qk.reshape(bt, nh, n, n) + s_ed + bias_ref[...].reshape(bt, 1, 1, n)

    # softmax in f32: exp on EUP, denominator via approx reciprocal (EUP, free slot)
    m_ = jnp.max(s, axis=-1, keepdims=True)
    e = jnp.exp(s - m_)
    p = e * pl.reciprocal(jnp.sum(e, axis=-1, keepdims=True), approx=True)   # (bt,nh,n,n) f32
    p_bf = p.astype(jnp.bfloat16)

    # Context: P@V batched over (batch, head); P.edge batched over (batch, query) -- MXU dots.
    ctx_qk = jnp.einsum('bnm,bmd->bnd', p_bf.reshape(bt * nh, n, n), v_bh,
                        preferred_element_type=jnp.float32).reshape(bt, nh, n, hd)
    p_bn = jnp.stack([p_bf[:, h].reshape(rows, n) for h in range(nh)], axis=1)  # (rows, nh, n)
    ctx_ed = jnp.einsum('bhm,bdm->bhd', p_bn, edge,
                        preferred_element_type=jnp.float32)                     # (rows, nh, hd)
    ctx = jnp.concatenate(
        [ctx_qk[:, h].reshape(rows, hd) + ctx_ed[:, h, :] for h in range(nh)],
        axis=-1)                                                                 # (rows, H)

    # Output projection, residual LayerNorms and FFN (f32 math, bf16 MXU inputs).
    attn = jnp.dot(ctx.astype(jnp.bfloat16), wao_ref[...],
                   preferred_element_type=jnp.float32) + bao_ref[...]
    h1 = _ln_k(attn + x32, ln1g_ref[...], ln1b_ref[...], eps)
    inter = _gelu_k(jnp.dot(h1.astype(jnp.bfloat16), wi_ref[...],
                            preferred_element_type=jnp.float32) + bi_ref[...])
    ffn = jnp.dot(inter.astype(jnp.bfloat16), wo_ref[...],
                  preferred_element_type=jnp.float32) + bo_ref[...]
    out_ref[...] = _ln_k(ffn + h1, ln2g_ref[...], ln2b_ref[...], eps)


def bert_layer_pallas(node_flat, att_bias, edge_emb, params, *, batch_block=8):
    """Graph-biased BertLayer.  node_flat (B,S,H) f32, att_bias (B,1,S) f32 additive,
    edge_emb (B,S,S,head_size) f32.  Returns (B,S,H) f32."""
    B, S, H = node_flat.shape
    hd = edge_emb.shape[-1]
    assert H % hd == 0
    nh = H // hd
    I = params['wi'].shape[1]

    # Batch-block selection:
    #  * tiny batch: one resident block (block dims == full array dims -> always tile-legal)
    #  * larger batch: multiples of 8 keep every BlockSpec tile-legal and give a >=2-step
    #    "parallel" grid so v7x's two TensorCores both get work; raise batch_block (16+) on
    #    v5e/v6e (128 MiB VMEM) to feed the MXU and amortize the ~0.35us per-grid-step overhead.
    if B <= batch_block:
        bt = B
    else:
        bt = max(8, (batch_block // 8) * 8)
    Bp = ((B + bt - 1) // bt) * bt
    if Bp != B:                                            # pad batch to a block multiple
        pad = Bp - B
        node_flat = jnp.pad(node_flat, ((0, pad), (0, 0), (0, 0)))
        att_bias = jnp.pad(att_bias, ((0, pad), (0, 0), (0, 0)))
        edge_emb = jnp.pad(edge_emb, ((0, pad), (0, 0), (0, 0), (0, 0)))

    # bf16 at the boundary; edge transposed wrapper-side so its last (lane) dim is S.
    hid2 = node_flat.reshape(Bp * S, H).astype(jnp.bfloat16)
    edge2 = jnp.transpose(edge_emb, (0, 1, 3, 2)).reshape(Bp * S, hd, S).astype(jnp.bfloat16)
    bias = att_bias.astype(jnp.float32)                    # (Bp, 1, S)

    scale = 1.0 / math.sqrt(hd)                            # folded into the Q columns
    bf = lambda a: a.astype(jnp.bfloat16)
    wqkv = jnp.concatenate([params['wq'] * scale, params['wk'], params['wv']], axis=1)  # (H, 3H)
    bqkv = jnp.concatenate([params['bq'] * scale, params['bk'], params['bv']]).reshape(1, -1)
    weights = [
        bf(wqkv), bqkv,
        bf(params['wao']), params['bao'].reshape(1, -1),
        params['ln1_g'].reshape(1, -1), params['ln1_b'].reshape(1, -1),
        bf(params['wi']), params['bi'].reshape(1, -1),
        bf(params['wo']), params['bo'].reshape(1, -1),
        params['ln2_g'].reshape(1, -1), params['ln2_b'].reshape(1, -1),
    ]

    def full_spec(a):
        nd = a.ndim
        return pl.BlockSpec(a.shape, lambda i, nd=nd: (0,) * nd)

    in_specs = [
        pl.BlockSpec((bt * S, H), lambda i: (i, 0)),              # hidden, token-major
        pl.BlockSpec((bt * S, hd, S), lambda i: (i, 0, 0)),       # edge, lane-dense (., hd, S)
        pl.BlockSpec((bt, 1, S), lambda i: (i, 0, 0)),            # additive attention mask
    ] + [full_spec(a) for a in weights]

    # Advisory cost estimate so XLA schedules the surrounding scatter/gather around the kernel.
    rows = Bp * S
    flops = (2 * rows * H * 3 * H          # fused QKV
             + 8 * Bp * nh * S * S * hd    # QK^T, P@V, Q.edge, P.edge
             + 2 * rows * H * H            # output projection
             + 4 * rows * H * I)           # FFN
    transc = Bp * nh * S * S + rows * I + 4 * rows
    bytes_acc = (hid2.size * hid2.dtype.itemsize + edge2.size * edge2.dtype.itemsize
                 + bias.size * bias.dtype.itemsize
                 + sum(int(w.size) * w.dtype.itemsize for w in weights)
                 + rows * H * 4)

    kernel = functools.partial(bert_layer_kernel, bt, S, nh, hd, CONFIG['layer_norm_eps'])
    out2 = pl.pallas_call(
        kernel,
        out_shape=jax.ShapeDtypeStruct((Bp * S, H), jnp.float32),
        grid=(Bp // bt,),
        in_specs=in_specs,
        out_specs=pl.BlockSpec((bt * S, H), lambda i: (i, 0)),
        compiler_params=pltpu.CompilerParams(
            dimension_semantics=("parallel",),
            vmem_limit_bytes=48 * 1024 * 1024),          # < v7x 64 MiB physical; > v5e/v6e defaults
        cost_estimate=pl.CostEstimate(flops=int(flops), transcendentals=int(transc),
                                      bytes_accessed=int(bytes_acc)),
    )(hid2, edge2, bias, *weights)
    return out2.reshape(Bp, S, H)[:B]


# ---------------- TransformerLayerFromBert forward ----------------
def transformer_layer_from_bert_forward(params, flat_index, flat_mask, node_emb,
                                        batch_size, max_seq_len, edge_embedding=None):
    H = CONFIG['hidden_size']
    # data-dependent scatter into the padded (B, S, H) layout -> plain JAX glue
    node_flat = jnp.zeros((batch_size, max_seq_len, H), jnp.float32)
    node_flat = node_flat.at[flat_index].set(node_emb)
    # additive attention mask, built once in the wrapper (hoisted out of the kernel)
    att_bias = (flat_mask.astype(jnp.float32) - 1.0)[:, None, :] * 1e9      # (B, 1, S)
    if edge_embedding is None:
        edge_embedding = jnp.zeros(
            (batch_size, max_seq_len, max_seq_len, HEAD_SIZE), jnp.float32)
    node_flat_new = bert_layer_pallas(node_flat, att_bias, edge_embedding, params)
    node_emb_new = node_flat_new[flat_index]                                 # gather back
    return (node_emb_new,)


# ---------------- pure-JAX reference (f32) for a sanity check ----------------
def transformer_layer_ref(params, flat_index, flat_mask, node_emb, B, S, edge):
    H, hd = CONFIG['hidden_size'], HEAD_SIZE
    nh = H // hd
    eps = CONFIG['layer_norm_eps']
    x = jnp.zeros((B, S, H), jnp.float32).at[flat_index].set(node_emb)
    bias = (flat_mask.astype(jnp.float32) - 1.0)[:, None, None, :] * 1e9
    q = x @ params['wq'] + params['bq']
    k = x @ params['wk'] + params['bk']
    v = x @ params['wv'] + params['bv']
    sp = lambda t: t.reshape(B, S, nh, hd).transpose(0, 2, 1, 3)
    qh, kh, vh = sp(q), sp(k), sp(v)
    s = jnp.einsum('bhnd,bhmd->bhnm', qh, kh) + jnp.einsum('bhnd,bnmd->bhnm', qh, edge)
    s = s / math.sqrt(hd) + bias
    pr = jax.nn.softmax(s, axis=-1)
    ctx = jnp.einsum('bhnm,bhmd->bhnd', pr, vh) + jnp.einsum('bhnm,bnmd->bhnd', pr, edge)
    ctx = ctx.transpose(0, 2, 1, 3).reshape(B, S, H)
    attn = ctx @ params['wao'] + params['bao']
    h1 = _ln_k(attn + x, params['ln1_g'], params['ln1_b'], eps)
    inter = _gelu_k(h1 @ params['wi'] + params['bi'])
    ffn = inter @ params['wo'] + params['bo']
    y = _ln_k(ffn + h1, params['ln2_g'], params['ln2_b'], eps)
    return y[flat_index]


# ---------------- deterministic parameter init ----------------
def init_params(key):
    H, I = CONFIG['hidden_size'], CONFIG['intermediate_size']
    keys = iter(jax.random.split(key, 16))
    nrm = lambda shape, s=0.02: s * jax.random.normal(next(keys), shape, jnp.float32)
    ones = lambda d: jnp.ones((d,), jnp.float32)
    zeros = lambda d: jnp.zeros((d,), jnp.float32)
    return dict(
        # stored (in, out) so the kernel does x @ W + b
        wq=nrm((H, H)), bq=zeros(H),
        wk=nrm((H, H)), bk=zeros(H),
        wv=nrm((H, H)), bv=zeros(H),
        wao=nrm((H, H)), bao=zeros(H),
        ln1_g=ones(H), ln1_b=zeros(H),
        wi=nrm((H, I)), bi=zeros(I),
        wo=nrm((I, H)), bo=zeros(H),
        ln2_g=ones(H), ln2_b=zeros(H),
    )


if __name__ == "__main__":
    key = jax.random.PRNGKey(0)
    kp, kd = jax.random.split(key)
    params = init_params(kp)

    B, S, H = 2, 8, CONFIG['hidden_size']
    ks = jax.random.split(kd, 4)

    # packed node embeddings: batch 0 has 5 nodes, batch 1 has 6 nodes
    n_nodes = [5, 6]
    batch_ids = jnp.concatenate(
        [jnp.full((n,), b, jnp.int32) for b, n in enumerate(n_nodes)])
    pos_ids = jnp.concatenate([jnp.arange(n, dtype=jnp.int32) for n in n_nodes])
    flat_index = (batch_ids, pos_ids)

    flat_mask = jnp.zeros((B, S), jnp.float32).at[flat_index].set(1.0)
    node_emb = jax.random.normal(ks[0], (int(sum(n_nodes)), H), jnp.float32)
    edge_embedding = 0.1 * jax.random.normal(ks[1], (B, S, S, HEAD_SIZE), jnp.float32)

    (node_emb_new,) = transformer_layer_from_bert_forward(
        params, flat_index, flat_mask, node_emb, B, S, edge_embedding)
    jax.block_until_ready(node_emb_new)

    assert node_emb_new.shape == node_emb.shape
    assert bool(jnp.all(jnp.isfinite(node_emb_new)))

    # check against the f32 pure-JAX reference (kernel uses bf16 boundary casts)
    ref = transformer_layer_ref(params, flat_index, flat_mask, node_emb, B, S,
                                edge_embedding)
    max_diff = float(jnp.max(jnp.abs(node_emb_new - ref)))
    assert max_diff < 5e-2, f"mismatch vs reference: {max_diff}"

    print("KERNEL_OK")
</pallas_src>

<mosaic_0001>
module attributes {stable_mosaic.version = 11 : i64} {
  func.func @bert_layer_kernel(%arg0: i32, %arg1: memref<16x32xbf16, #tpu.memory_space<vmem>>, %arg2: memref<16x8x8xbf16, #tpu.memory_space<vmem>>, %arg3: memref<2x1x8xf32, #tpu.memory_space<vmem>>, %arg4: memref<32x96xbf16, #tpu.memory_space<vmem>>, %arg5: memref<1x96xf32, #tpu.memory_space<vmem>>, %arg6: memref<32x32xbf16, #tpu.memory_space<vmem>>, %arg7: memref<1x32xf32, #tpu.memory_space<vmem>>, %arg8: memref<1x32xf32, #tpu.memory_space<vmem>>, %arg9: memref<1x32xf32, #tpu.memory_space<vmem>>, %arg10: memref<32x64xbf16, #tpu.memory_space<vmem>>, %arg11: memref<1x64xf32, #tpu.memory_space<vmem>>, %arg12: memref<64x32xbf16, #tpu.memory_space<vmem>>, %arg13: memref<1x32xf32, #tpu.memory_space<vmem>>, %arg14: memref<1x32xf32, #tpu.memory_space<vmem>>, %arg15: memref<1x32xf32, #tpu.memory_space<vmem>>, %arg16: memref<16x32xf32, #tpu.memory_space<vmem>>) attributes {dimension_semantics = [#tpu.dimension_semantics<parallel>], iteration_bounds = array<i64: 1>, scalar_prefetch = 0 : i64, scratch_operands = 0 : i64, tpu.core_type = #tpu.core_type<tc>, window_params = [{transform_indices = @transform_0, window_bounds = array<i64: 16, 32>}, {transform_indices = @transform_1, window_bounds = array<i64: 16, 8, 8>}, {transform_indices = @transform_2, window_bounds = array<i64: 2, 1, 8>}, {pipeline_mode = #tpu.pipeline_mode<synchronous>, transform_indices = @transform_3, window_bounds = array<i64: 32, 96>}, {pipeline_mode = #tpu.pipeline_mode<synchronous>, transform_indices = @transform_4, window_bounds = array<i64: 1, 96>}, {pipeline_mode = #tpu.pipeline_mode<synchronous>, transform_indices = @transform_5, window_bounds = array<i64: 32, 32>}, {pipeline_mode = #tpu.pipeline_mode<synchronous>, transform_indices = @transform_6, window_bounds = array<i64: 1, 32>}, {pipeline_mode = #tpu.pipeline_mode<synchronous>, transform_indices = @transform_7, window_bounds = array<i64: 1, 32>}, {pipeline_mode = #tpu.pipeline_mode<synchronous>, transform_indices = @transform_8, window_bounds = array<i64: 1, 32>}, {pipeline_mode = #tpu.pipeline_mode<synchronous>, transform_indices = @transform_9, window_bounds = array<i64: 32, 64>}, {pipeline_mode = #tpu.pipeline_mode<synchronous>, transform_indices = @transform_10, window_bounds = array<i64: 1, 64>}, {pipeline_mode = #tpu.pipeline_mode<synchronous>, transform_indices = @transform_11, window_bounds = array<i64: 64, 32>}, {pipeline_mode = #tpu.pipeline_mode<synchronous>, transform_indices = @transform_12, window_bounds = array<i64: 1, 32>}, {pipeline_mode = #tpu.pipeline_mode<synchronous>, transform_indices = @transform_13, window_bounds = array<i64: 1, 32>}, {pipeline_mode = #tpu.pipeline_mode<synchronous>, transform_indices = @transform_14, window_bounds = array<i64: 1, 32>}, {transform_indices = @transform_15, window_bounds = array<i64: 16, 32>}]} {
    %c0 = arith.constant 0 : index
    %c0_0 = arith.constant 0 : index
    %0 = vector.load %arg1[%c0, %c0_0] : memref<16x32xbf16, #tpu.memory_space<vmem>>, vector<16x32xbf16>
    %1 = arith.extf %0 : vector<16x32xbf16> to vector<16x32xf32>
    %c0_1 = arith.constant 0 : index
    %c0_2 = arith.constant 0 : index
    %2 = vector.load %arg4[%c0_1, %c0_2] : memref<32x96xbf16, #tpu.memory_space<vmem>>, vector<32x96xbf16>
    %cst = arith.constant dense<0.000000e+00> : vector<16x96xf32>
    %3 = tpu.matmul %0, %2, %cst {dimension_numbers = #tpu.dot_dimension_numbers<[1], [0], [0], [1], [0, 0, 1, 1], [], []>} : vector<16x32xbf16>, vector<32x96xbf16>, vector<16x96xf32> -> vector<16x96xf32>
    %c0_3 = arith.constant 0 : index
    %c0_4 = arith.constant 0 : index
    %4 = vector.load %arg5[%c0_3, %c0_4] : memref<1x96xf32, #tpu.memory_space<vmem>>, vector<1x96xf32>
    %5 = vector.broadcast %4 : vector<1x96xf32> to vector<16x96xf32>
    %6 = arith.addf %3, %5 : vector<16x96xf32>
    %7 = vector.extract_strided_slice %6 {offsets = [0, 0], sizes = [16, 8], strides = [1, 1]} : vector<16x96xf32> to vector<16x8xf32>
    %8 = vector.extract_strided_slice %6 {offsets = [0, 8], sizes = [16, 8], strides = [1, 1]} : vector<16x96xf32> to vector<16x8xf32>
    %9 = vector.extract_strided_slice %6 {offsets = [0, 16], sizes = [16, 8], strides = [1, 1]} : vector<16x96xf32> to vector<16x8xf32>
    %10 = vector.extract_strided_slice %6 {offsets = [0, 24], sizes = [16, 8], strides = [1, 1]} : vector<16x96xf32> to vector<16x8xf32>
    %11 = vector.extract_strided_slice %6 {offsets = [0, 32], sizes = [16, 8], strides = [1, 1]} : vector<16x96xf32> to vector<16x8xf32>
    %12 = vector.extract_strided_slice %6 {offsets = [0, 40], sizes = [16, 8], strides = [1, 1]} : vector<16x96xf32> to vector<16x8xf32>
    %13 = vector.extract_strided_slice %6 {offsets = [0, 48], sizes = [16, 8], strides = [1, 1]} : vector<16x96xf32> to vector<16x8xf32>
    %14 = vector.extract_strided_slice %6 {offsets = [0, 56], sizes = [16, 8], strides = [1, 1]} : vector<16x96xf32> to vector<16x8xf32>
    %15 = vector.extract_strided_slice %6 {offsets = [0, 64], sizes = [16, 8], strides = [1, 1]} : vector<16x96xf32> to vector<16x8xf32>
    %16 = vector.extract_strided_slice %6 {offsets = [0, 72], sizes = [16, 8], strides = [1, 1]} : vector<16x96xf32> to vector<16x8xf32>
    %17 = vector.extract_strided_slice %6 {offsets = [0, 80], sizes = [16, 8], strides = [1, 1]} : vector<16x96xf32> to vector<16x8xf32>
    %18 = vector.extract_strided_slice %6 {offsets = [0, 88], sizes = [16, 8], strides = [1, 1]} : vector<16x96xf32> to vector<16x8xf32>
    %19 = vector.shape_cast %7 : vector<16x8xf32> to vector<2x8x8xf32>
    %20 = vector.shape_cast %8 : vector<16x8xf32> to vector<2x8x8xf32>
    %21 = vector.shape_cast %9 : vector<16x8xf32> to vector<2x8x8xf32>
    %22 = vector.shape_cast %10 : vector<16x8xf32> to vector<2x8x8xf32>
    %23 = vector.shape_cast %19 : vector<2x8x8xf32> to vector<2x1x8x8xf32>
    %24 = vector.shape_cast %20 : vector<2x8x8xf32> to vector<2x1x8x8xf32>
    %25 = vector.shape_cast %21 : vector<2x8x8xf32> to vector<2x1x8x8xf32>
    %26 = vector.shape_cast %22 : vector<2x8x8xf32> to vector<2x1x8x8xf32>
    %27 = tpu.concatenate %23, %24, %25, %26 in 1 : vector<2x1x8x8xf32>, vector<2x1x8x8xf32>, vector<2x1x8x8xf32>, vector<2x1x8x8xf32> -> vector<2x4x8x8xf32>
    %28 = vector.shape_cast %27 : vector<2x4x8x8xf32> to vector<8x8x8xf32>
    %29 = arith.truncf %28 : vector<8x8x8xf32> to vector<8x8x8xbf16>
    %30 = vector.shape_cast %11 : vector<16x8xf32> to vector<2x8x8xf32>
    %31 = vector.shape_cast %12 : vector<16x8xf32> to vector<2x8x8xf32>
    %32 = vector.shape_cast %13 : vector<16x8xf32> to vector<2x8x8xf32>
    %33 = vector.shape_cast %14 : vector<16x8xf32> to vector<2x8x8xf32>
    %34 = vector.shape_cast %30 : vector<2x8x8xf32> to vector<2x1x8x8xf32>
    %35 = vector.shape_cast %31 : vector<2x8x8xf32> to vector<2x1x8x8xf32>
    %36 = vector.shape_cast %32 : vector<2x8x8xf32> to vector<2x1x8x8xf32>
    %37 = vector.shape_cast %33 : vector<2x8x8xf32> to vector<2x1x8x8xf32>
    %38 = tpu.concatenate %34, %35, %36, %37 in 1 : vector<2x1x8x8xf32>, vector<2x1x8x8xf32>, vector<2x1x8x8xf32>, vector<2x1x8x8xf32> -> vector<2x4x8x8xf32>
    %39 = vector.shape_cast %38 : vector<2x4x8x8xf32> to vector<8x8x8xf32>
    %40 = arith.truncf %39 : vector<8x8x8xf32> to vector<8x8x8xbf16>
    %41 = vector.shape_cast %15 : vector<16x8xf32> to vector<2x8x8xf32>
    %42 = vector.shape_cast %16 : vector<16x8xf32> to vector<2x8x8xf32>
    %43 = vector.shape_cast %17 : vector<16x8xf32> to vector<2x8x8xf32>
    %44 = vector.shape_cast %18 : vector<16x8xf32> to vector<2x8x8xf32>
    %45 = vector.shape_cast %41 : vector<2x8x8xf32> to vector<2x1x8x8xf32>
    %46 = vector.shape_cast %42 : vector<2x8x8xf32> to vector<2x1x8x8xf32>
    %47 = vector.shape_cast %43 : vector<2x8x8xf32> to vector<2x1x8x8xf32>
    %48 = vector.shape_cast %44 : vector<2x8x8xf32> to vector<2x1x8x8xf32>
    %49 = tpu.concatenate %45, %46, %47, %48 in 1 : vector<2x1x8x8xf32>, vector<2x1x8x8xf32>, vector<2x1x8x8xf32>, vector<2x1x8x8xf32> -> vector<2x4x8x8xf32>
    %50 = vector.shape_cast %49 : vector<2x4x8x8xf32> to vector<8x8x8xf32>
    %51 = arith.truncf %50 : vector<8x8x8xf32> to vector<8x8x8xbf16>
    %52 = vector.shape_cast %7 : vector<16x8xf32> to vector<16x1x8xf32>
    %53 = vector.shape_cast %8 : vector<16x8xf32> to vector<16x1x8xf32>
    %54 = vector.shape_cast %9 : vector<16x8xf32> to vector<16x1x8xf32>
    %55 = vector.shape_cast %10 : vector<16x8xf32> to vector<16x1x8xf32>
    %56 = tpu.concatenate %52, %53, %54, %55 in 1 : vector<16x1x8xf32>, vector<16x1x8xf32>, vector<16x1x8xf32>, vector<16x1x8xf32> -> vector<16x4x8xf32>
    %57 = arith.truncf %56 : vector<16x4x8xf32> to vector<16x4x8xbf16>
    %c0_5 = arith.constant 0 : index
    %c0_6 = arith.constant 0 : index
    %c0_7 = arith.constant 0 : index
    %58 = vector.load %arg2[%c0_5, %c0_6, %c0_7] : memref<16x8x8xbf16, #tpu.memory_space<vmem>>, vector<16x8x8xbf16>
    "tpu.trace_start"() <{level = 10 : i32, message = "bnd,bmd->bnm"}> : () -> ()
    %cst_8 = arith.constant dense<0.000000e+00> : vector<8x8x8xf32>
    %59 = tpu.matmul %29, %40, %cst_8 {dimension_numbers = #tpu.dot_dimension_numbers<[2], [2], [1], [1], [0, 0, 0, 1, 1, 1], [0], [0]>} : vector<8x8x8xbf16>, vector<8x8x8xbf16>, vector<8x8x8xf32> -> vector<8x8x8xf32>
    "tpu.trace_stop"() : () -> ()
    "tpu.trace_start"() <{level = 10 : i32, message = "bhd,bdm->bhm"}> : () -> ()
    %cst_9 = arith.constant dense<0.000000e+00> : vector<16x4x8xf32>
    %60 = tpu.matmul %57, %58, %cst_9 {dimension_numbers = #tpu.dot_dimension_numbers<[2], [1], [1], [2], [0, 0, 0, 1, 1, 2], [0], [0]>} : vector<16x4x8xbf16>, vector<16x8x8xbf16>, vector<16x4x8xf32> -> vector<16x4x8xf32>
    "tpu.trace_stop"() : () -> ()
    %61 = vector.extract_strided_slice %60 {offsets = [0, 0, 0], sizes = [16, 1, 8], strides = [1, 1, 1]} : vector<16x4x8xf32> to vector<16x1x8xf32>
    %62 = vector.shape_cast %61 : vector<16x1x8xf32> to vector<16x8xf32>
    %63 = vector.shape_cast %62 : vector<16x8xf32> to vector<2x8x8xf32>
    %64 = vector.extract_strided_slice %60 {offsets = [0, 1, 0], sizes = [16, 1, 8], strides = [1, 1, 1]} : vector<16x4x8xf32> to vector<16x1x8xf32>
    %65 = vector.shape_cast %64 : vector<16x1x8xf32> to vector<16x8xf32>
    %66 = vector.shape_cast %65 : vector<16x8xf32> to vector<2x8x8xf32>
    %67 = vector.extract_strided_slice %60 {offsets = [0, 2, 0], sizes = [16, 1, 8], strides = [1, 1, 1]} : vector<16x4x8xf32> to vector<16x1x8xf32>
    %68 = vector.shape_cast %67 : vector<16x1x8xf32> to vector<16x8xf32>
    %69 = vector.shape_cast %68 : vector<16x8xf32> to vector<2x8x8xf32>
    %70 = vector.extract_strided_slice %60 {offsets = [0, 3, 0], sizes = [16, 1, 8], strides = [1, 1, 1]} : vector<16x4x8xf32> to vector<16x1x8xf32>
    %71 = vector.shape_cast %70 : vector<16x1x8xf32> to vector<16x8xf32>
    %72 = vector.shape_cast %71 : vector<16x8xf32> to vector<2x8x8xf32>
    %73 = vector.shape_cast %63 : vector<2x8x8xf32> to vector<2x1x8x8xf32>
    %74 = vector.shape_cast %66 : vector<2x8x8xf32> to vector<2x1x8x8xf32>
    %75 = vector.shape_cast %69 : vector<2x8x8xf32> to vector<2x1x8x8xf32>
    %76 = vector.shape_cast %72 : vector<2x8x8xf32> to vector<2x1x8x8xf32>
    %77 = tpu.concatenate %73, %74, %75, %76 in 1 : vector<2x1x8x8xf32>, vector<2x1x8x8xf32>, vector<2x1x8x8xf32>, vector<2x1x8x8xf32> -> vector<2x4x8x8xf32>
    %78 = vector.shape_cast %59 : vector<8x8x8xf32> to vector<2x4x8x8xf32>
    %79 = arith.addf %78, %77 : vector<2x4x8x8xf32>
    %c0_10 = arith.constant 0 : index
    %c0_11 = arith.constant 0 : index
    %c0_12 = arith.constant 0 : index
    %80 = vector.load %arg3[%c0_10, %c0_11, %c0_12] : memref<2x1x8xf32, #tpu.memory_space<vmem>>, vector<2x1x8xf32>
    %81 = vector.shape_cast %80 : vector<2x1x8xf32> to vector<2x1x1x8xf32>
    %82 = vector.broadcast %81 : vector<2x1x1x8xf32> to vector<2x4x8x8xf32>
    %83 = arith.addf %79, %82 : vector<2x4x8x8xf32>
    %cst_13 = arith.constant dense<0xFF800000> : vector<2x4x8xf32>
    %84 = vector.multi_reduction <maximumf>, %83, %cst_13 [3] : vector<2x4x8x8xf32> to vector<2x4x8xf32>
    %85 = vector.shape_cast %84 : vector<2x4x8xf32> to vector<2x4x8x1xf32>
    %86 = vector.broadcast %85 : vector<2x4x8x1xf32> to vector<2x4x8x8xf32>
    %87 = arith.subf %83, %86 : vector<2x4x8x8xf32>
    %88 = math.exp %87 : vector<2x4x8x8xf32>
    %cst_14 = arith.constant dense<0.000000e+00> : vector<2x4x8xf32>
    %89 = vector.multi_reduction <add>, %88, %cst_14 [3] : vector<2x4x8x8xf32> to vector<2x4x8xf32>
    %90 = vector.shape_cast %89 : vector<2x4x8xf32> to vector<2x4x8x1xf32>
    %91 = tpu.reciprocal %90 {approx = true} : vector<2x4x8x1xf32> -> vector<2x4x8x1xf32>
    %92 = vector.broadcast %91 : vector<2x4x8x1xf32> to vector<2x4x8x8xf32>
    %93 = arith.mulf %88, %92 : vector<2x4x8x8xf32>
    %94 = arith.truncf %93 : vector<2x4x8x8xf32> to vector<2x4x8x8xbf16>
    %95 = vector.shape_cast %94 : vector<2x4x8x8xbf16> to vector<8x8x8xbf16>
    "tpu.trace_start"() <{level = 10 : i32, message = "bnm,bmd->bnd"}> : () -> ()
    %cst_15 = arith.constant dense<0.000000e+00> : vector<8x8x8xf32>
    %96 = tpu.matmul %95, %51, %cst_15 {dimension_numbers = #tpu.dot_dimension_numbers<[2], [1], [1], [2], [0, 0, 0, 1, 1, 2], [0], [0]>} : vector<8x8x8xbf16>, vector<8x8x8xbf16>, vector<8x8x8xf32> -> vector<8x8x8xf32>
    "tpu.trace_stop"() : () -> ()
    %97 = vector.shape_cast %96 : vector<8x8x8xf32> to vector<2x4x8x8xf32>
    %98 = vector.extract_strided_slice %94 {offsets = [0, 0, 0, 0], sizes = [2, 1, 8, 8], strides = [1, 1, 1, 1]} : vector<2x4x8x8xbf16> to vector<2x1x8x8xbf16>
    %99 = vector.shape_cast %98 : vector<2x1x8x8xbf16> to vector<2x8x8xbf16>
    %100 = vector.shape_cast %99 : vector<2x8x8xbf16> to vector<16x8xbf16>
    %101 = vector.extract_strided_slice %94 {offsets = [0, 1, 0, 0], sizes = [2, 1, 8, 8], strides = [1, 1, 1, 1]} : vector<2x4x8x8xbf16> to vector<2x1x8x8xbf16>
    %102 = vector.shape_cast %101 : vector<2x1x8x8xbf16> to vector<2x8x8xbf16>
    %103 = vector.shape_cast %102 : vector<2x8x8xbf16> to vector<16x8xbf16>
    %104 = vector.extract_strided_slice %94 {offsets = [0, 2, 0, 0], sizes = [2, 1, 8, 8], strides = [1, 1, 1, 1]} : vector<2x4x8x8xbf16> to vector<2x1x8x8xbf16>
    %105 = vector.shape_cast %104 : vector<2x1x8x8xbf16> to vector<2x8x8xbf16>
    %106 = vector.shape_cast %105 : vector<2x8x8xbf16> to vector<16x8xbf16>
    %107 = vector.extract_strided_slice %94 {offsets = [0, 3, 0, 0], sizes = [2, 1, 8, 8], strides = [1, 1, 1, 1]} : vector<2x4x8x8xbf16> to vector<2x1x8x8xbf16>
    %108 = vector.shape_cast %107 : vector<2x1x8x8xbf16> to vector<2x8x8xbf16>
    %109 = vector.shape_cast %108 : vector<2x8x8xbf16> to vector<16x8xbf16>
    %110 = vector.shape_cast %100 : vector<16x8xbf16> to vector<16x1x8xbf16>
    %111 = vector.shape_cast %103 : vector<16x8xbf16> to vector<16x1x8xbf16>
    %112 = vector.shape_cast %106 : vector<16x8xbf16> to vector<16x1x8xbf16>
    %113 = vector.shape_cast %109 : vector<16x8xbf16> to vector<16x1x8xbf16>
    %114 = tpu.concatenate %110, %111, %112, %113 in 1 : vector<16x1x8xbf16>, vector<16x1x8xbf16>, vector<16x1x8xbf16>, vector<16x1x8xbf16> -> vector<16x4x8xbf16>
    "tpu.trace_start"() <{level = 10 : i32, message = "bhm,bdm->bhd"}> : () -> ()
    %cst_16 = arith.constant dense<0.000000e+00> : vector<16x4x8xf32>
    %115 = tpu.matmul %114, %58, %cst_16 {dimension_numbers = #tpu.dot_dimension_numbers<[2], [2], [1], [1], [0, 0, 0, 1, 1, 1], [0], [0]>} : vector<16x4x8xbf16>, vector<16x8x8xbf16>, vector<16x4x8xf32> -> vector<16x4x8xf32>
    "tpu.trace_stop"() : () -> ()
    %116 = vector.extract_strided_slice %97 {offsets = [0, 0, 0, 0], sizes = [2, 1, 8, 8], strides = [1, 1, 1, 1]} : vector<2x4x8x8xf32> to vector<2x1x8x8xf32>
    %117 = vector.shape_cast %116 : vector<2x1x8x8xf32> to vector<2x8x8xf32>
    %118 = vector.shape_cast %117 : vector<2x8x8xf32> to vector<16x8xf32>
    %119 = vector.extract_strided_slice %115 {offsets = [0, 0, 0], sizes = [16, 1, 8], strides = [1, 1, 1]} : vector<16x4x8xf32> to vector<16x1x8xf32>
    %120 = vector.shape_cast %119 : vector<16x1x8xf32> to vector<16x8xf32>
    %121 = arith.addf %118, %120 : vector<16x8xf32>
    %122 = vector.extract_strided_slice %97 {offsets = [0, 1, 0, 0], sizes = [2, 1, 8, 8], strides = [1, 1, 1, 1]} : vector<2x4x8x8xf32> to vector<2x1x8x8xf32>
    %123 = vector.shape_cast %122 : vector<2x1x8x8xf32> to vector<2x8x8xf32>
    %124 = vector.shape_cast %123 : vector<2x8x8xf32> to vector<16x8xf32>
    %125 = vector.extract_strided_slice %115 {offsets = [0, 1, 0], sizes = [16, 1, 8], strides = [1, 1, 1]} : vector<16x4x8xf32> to vector<16x1x8xf32>
    %126 = vector.shape_cast %125 : vector<16x1x8xf32> to vector<16x8xf32>
    %127 = arith.addf %124, %126 : vector<16x8xf32>
    %128 = vector.extract_strided_slice %97 {offsets = [0, 2, 0, 0], sizes = [2, 1, 8, 8], strides = [1, 1, 1, 1]} : vector<2x4x8x8xf32> to vector<2x1x8x8xf32>
    %129 = vector.shape_cast %128 : vector<2x1x8x8xf32> to vector<2x8x8xf32>
    %130 = vector.shape_cast %129 : vector<2x8x8xf32> to vector<16x8xf32>
    %131 = vector.extract_strided_slice %115 {offsets = [0, 2, 0], sizes = [16, 1, 8], strides = [1, 1, 1]} : vector<16x4x8xf32> to vector<16x1x8xf32>
    %132 = vector.shape_cast %131 : vector<16x1x8xf32> to vector<16x8xf32>
    %133 = arith.addf %130, %132 : vector<16x8xf32>
    %134 = vector.extract_strided_slice %97 {offsets = [0, 3, 0, 0], sizes = [2, 1, 8, 8], strides = [1, 1, 1, 1]} : vector<2x4x8x8xf32> to vector<2x1x8x8xf32>
    %135 = vector.shape_cast %134 : vector<2x1x8x8xf32> to vector<2x8x8xf32>
    %136 = vector.shape_cast %135 : vector<2x8x8xf32> to vector<16x8xf32>
    %137 = vector.extract_strided_slice %115 {offsets = [0, 3, 0], sizes = [16, 1, 8], strides = [1, 1, 1]} : vector<16x4x8xf32> to vector<16x1x8xf32>
    %138 = vector.shape_cast %137 : vector<16x1x8xf32> to vector<16x8xf32>
    %139 = arith.addf %136, %138 : vector<16x8xf32>
    %140 = tpu.concatenate %121, %127, %133, %139 in 1 : vector<16x8xf32>, vector<16x8xf32>, vector<16x8xf32>, vector<16x8xf32> -> vector<16x32xf32>
    %141 = arith.truncf %140 : vector<16x32xf32> to vector<16x32xbf16>
    %c0_17 = arith.constant 0 : index
    %c0_18 = arith.constant 0 : index
    %142 = vector.load %arg6[%c0_17, %c0_18] : memref<32x32xbf16, #tpu.memory_space<vmem>>, vector<32x32xbf16>
    %cst_19 = arith.constant dense<0.000000e+00> : vector<16x32xf32>
    %143 = tpu.matmul %141, %142, %cst_19 {dimension_numbers = #tpu.dot_dimension_numbers<[1], [0], [0], [1], [0, 0, 1, 1], [], []>} : vector<16x32xbf16>, vector<32x32xbf16>, vector<16x32xf32> -> vector<16x32xf32>
    %c0_20 = arith.constant 0 : index
    %c0_21 = arith.constant 0 : index
    %144 = vector.load %arg7[%c0_20, %c0_21] : memref<1x32xf32, #tpu.memory_space<vmem>>, vector<1x32xf32>
    %145 = vector.broadcast %144 : vector<1x32xf32> to vector<16x32xf32>
    %146 = arith.addf %143, %145 : vector<16x32xf32>
    %147 = arith.addf %146, %1 : vector<16x32xf32>
    %c0_22 = arith.constant 0 : index
    %c0_23 = arith.constant 0 : index
    %148 = vector.load %arg8[%c0_22, %c0_23] : memref<1x32xf32, #tpu.memory_space<vmem>>, vector<1x32xf32>
    %c0_24 = arith.constant 0 : index
    %c0_25 = arith.constant 0 : index
    %149 = vector.load %arg9[%c0_24, %c0_25] : memref<1x32xf32, #tpu.memory_space<vmem>>, vector<1x32xf32>
    %cst_26 = arith.constant dense<0.000000e+00> : vector<16xf32>
    %150 = vector.multi_reduction <add>, %147, %cst_26 [1] : vector<16x32xf32> to vector<16xf32>
    %151 = vector.shape_cast %150 : vector<16xf32> to vector<16x1xf32>
    %cst_27 = arith.constant 3.200000e+01 : f32
    %152 = vector.broadcast %cst_27 : f32 to vector<16x1xf32>
    %153 = arith.divf %151, %152 : vector<16x1xf32>
    %154 = vector.broadcast %153 : vector<16x1xf32> to vector<16x32xf32>
    %155 = arith.subf %147, %154 : vector<16x32xf32>
    %156 = arith.mulf %155, %155 : vector<16x32xf32>
    %cst_28 = arith.constant dense<0.000000e+00> : vector<16xf32>
    %157 = vector.multi_reduction <add>, %156, %cst_28 [1] : vector<16x32xf32> to vector<16xf32>
    %158 = vector.shape_cast %157 : vector<16xf32> to vector<16x1xf32>
    %cst_29 = arith.constant 3.200000e+01 : f32
    %159 = vector.broadcast %cst_29 : f32 to vector<16x1xf32>
    %160 = arith.divf %158, %159 : vector<16x1xf32>
    %161 = vector.broadcast %153 : vector<16x1xf32> to vector<16x32xf32>
    %162 = arith.subf %147, %161 : vector<16x32xf32>
    %cst_30 = arith.constant 9.99999996E-13 : f32
    %163 = vector.broadcast %cst_30 : f32 to vector<16x1xf32>
    %164 = arith.addf %160, %163 : vector<16x1xf32>
    %165 = math.rsqrt %164 : vector<16x1xf32>
    %166 = vector.broadcast %165 : vector<16x1xf32> to vector<16x32xf32>
    %167 = arith.mulf %162, %166 : vector<16x32xf32>
    %168 = vector.broadcast %148 : vector<1x32xf32> to vector<16x32xf32>
    %169 = arith.mulf %167, %168 : vector<16x32xf32>
    %170 = vector.broadcast %149 : vector<1x32xf32> to vector<16x32xf32>
    %171 = arith.addf %169, %170 : vector<16x32xf32>
    %172 = arith.truncf %171 : vector<16x32xf32> to vector<16x32xbf16>
    %c0_31 = arith.constant 0 : index
    %c0_32 = arith.constant 0 : index
    %173 = vector.load %arg10[%c0_31, %c0_32] : memref<32x64xbf16, #tpu.memory_space<vmem>>, vector<32x64xbf16>
    %cst_33 = arith.constant dense<0.000000e+00> : vector<16x64xf32>
    %174 = tpu.matmul %172, %173, %cst_33 {dimension_numbers = #tpu.dot_dimension_numbers<[1], [0], [0], [1], [0, 0, 1, 1], [], []>} : vector<16x32xbf16>, vector<32x64xbf16>, vector<16x64xf32> -> vector<16x64xf32>
    %c0_34 = arith.constant 0 : index
    %c0_35 = arith.constant 0 : index
    %175 = vector.load %arg11[%c0_34, %c0_35] : memref<1x64xf32, #tpu.memory_space<vmem>>, vector<1x64xf32>
    %176 = vector.broadcast %175 : vector<1x64xf32> to vector<16x64xf32>
    %177 = arith.addf %174, %176 : vector<16x64xf32>
    %cst_36 = arith.constant 5.000000e-01 : f32
    %178 = vector.broadcast %cst_36 : f32 to vector<16x64xf32>
    %179 = arith.mulf %178, %177 : vector<16x64xf32>
    %cst_37 = arith.constant 4.471500e-02 : f32
    %180 = vector.broadcast %cst_37 : f32 to vector<16x64xf32>
    %181 = arith.mulf %180, %177 : vector<16x64xf32>
    %182 = arith.mulf %181, %177 : vector<16x64xf32>
    %183 = arith.mulf %182, %177 : vector<16x64xf32>
    %184 = arith.addf %177, %183 : vector<16x64xf32>
    %cst_38 = arith.constant 0.797884583 : f32
    %185 = vector.broadcast %cst_38 : f32 to vector<16x64xf32>
    %186 = arith.mulf %185, %184 : vector<16x64xf32>
    %187 = math.tanh %186 : vector<16x64xf32>
    %cst_39 = arith.constant 1.000000e+00 : f32
    %188 = vector.broadcast %cst_39 : f32 to vector<16x64xf32>
    %189 = arith.addf %188, %187 : vector<16x64xf32>
    %190 = arith.mulf %179, %189 : vector<16x64xf32>
    %191 = arith.truncf %190 : vector<16x64xf32> to vector<16x64xbf16>
    %c0_40 = arith.constant 0 : index
    %c0_41 = arith.constant 0 : index
    %192 = vector.load %arg12[%c0_40, %c0_41] : memref<64x32xbf16, #tpu.memory_space<vmem>>, vector<64x32xbf16>
    %cst_42 = arith.constant dense<0.000000e+00> : vector<16x32xf32>
    %193 = tpu.matmul %191, %192, %cst_42 {dimension_numbers = #tpu.dot_dimension_numbers<[1], [0], [0], [1], [0, 0, 1, 1], [], []>} : vector<16x64xbf16>, vector<64x32xbf16>, vector<16x32xf32> -> vector<16x32xf32>
    %c0_43 = arith.constant 0 : index
    %c0_44 = arith.constant 0 : index
    %194 = vector.load %arg13[%c0_43, %c0_44] : memref<1x32xf32, #tpu.memory_space<vmem>>, vector<1x32xf32>
    %195 = vector.broadcast %194 : vector<1x32xf32> to vector<16x32xf32>
    %196 = arith.addf %193, %195 : vector<16x32xf32>
    %197 = arith.addf %196, %171 : vector<16x32xf32>
    %c0_45 = arith.constant 0 : index
    %c0_46 = arith.constant 0 : index
    %198 = vector.load %arg14[%c0_45, %c0_46] : memref<1x32xf32, #tpu.memory_space<vmem>>, vector<1x32xf32>
    %c0_47 = arith.constant 0 : index
    %c0_48 = arith.constant 0 : index
    %199 = vector.load %arg15[%c0_47, %c0_48] : memref<1x32xf32, #tpu.memory_space<vmem>>, vector<1x32xf32>
    %cst_49 = arith.constant dense<0.000000e+00> : vector<16xf32>
    %200 = vector.multi_reduction <add>, %197, %cst_49 [1] : vector<16x32xf32> to vector<16xf32>
    %201 = vector.shape_cast %200 : vector<16xf32> to vector<16x1xf32>
    %cst_50 = arith.constant 3.200000e+01 : f32
    %202 = vector.broadcast %cst_50 : f32 to vector<16x1xf32>
    %203 = arith.divf %201, %202 : vector<16x1xf32>
    %204 = vector.broadcast %203 : vector<16x1xf32> to vector<16x32xf32>
    %205 = arith.subf %197, %204 : vector<16x32xf32>
    %206 = arith.mulf %205, %205 : vector<16x32xf32>
    %cst_51 = arith.constant dense<0.000000e+00> : vector<16xf32>
    %207 = vector.multi_reduction <add>, %206, %cst_51 [1] : vector<16x32xf32> to vector<16xf32>
    %208 = vector.shape_cast %207 : vector<16xf32> to vector<16x1xf32>
    %cst_52 = arith.constant 3.200000e+01 : f32
    %209 = vector.broadcast %cst_52 : f32 to vector<16x1xf32>
    %210 = arith.divf %208, %209 : vector<16x1xf32>
    %211 = vector.broadcast %203 : vector<16x1xf32> to vector<16x32xf32>
    %212 = arith.subf %197, %211 : vector<16x32xf32>
    %cst_53 = arith.constant 9.99999996E-13 : f32
    %213 = vector.broadcast %cst_53 : f32 to vector<16x1xf32>
    %214 = arith.addf %210, %213 : vector<16x1xf32>
    %215 = math.rsqrt %214 : vector<16x1xf32>
    %216 = vector.broadcast %215 : vector<16x1xf32> to vector<16x32xf32>
    %217 = arith.mulf %212, %216 : vector<16x32xf32>
    %218 = vector.broadcast %198 : vector<1x32xf32> to vector<16x32xf32>
    %219 = arith.mulf %217, %218 : vector<16x32xf32>
    %220 = vector.broadcast %199 : vector<1x32xf32> to vector<16x32xf32>
    %221 = arith.addf %219, %220 : vector<16x32xf32>
    %c0_54 = arith.constant 0 : index
    %c0_55 = arith.constant 0 : index
    %222 = vector.load %arg16[%c0_54, %c0_55] : memref<16x32xf32, #tpu.memory_space<vmem>>, vector<16x32xf32>
    tpu.vector_store %arg16[%c0_54, %c0_55], %221 {strides = array<i32>} : memref<16x32xf32, #tpu.memory_space<vmem>>, vector<16x32xf32>,
    return
  }
  func.func @transform_0(%arg0: i32) -> (i32, i32) {
    %c0_i32 = arith.constant 0 : i32
    %c0_i32_0 = arith.constant 0 : i32
    return %arg0, %c0_i32 : i32, i32
  }
  func.func @transform_1(%arg0: i32) -> (i32, i32, i32) {
    %c0_i32 = arith.constant 0 : i32
    %c0_i32_0 = arith.constant 0 : i32
    %c0_i32_1 = arith.constant 0 : i32
    return %arg0, %c0_i32, %c0_i32_0 : i32, i32, i32
  }
  func.func @transform_2(%arg0: i32) -> (i32, i32, i32) {
    %c0_i32 = arith.constant 0 : i32
    %c0_i32_0 = arith.constant 0 : i32
    %c0_i32_1 = arith.constant 0 : i32
    return %arg0, %c0_i32, %c0_i32_0 : i32, i32, i32
  }
  func.func @transform_3(%arg0: i32) -> (i32, i32) {
    %c0_i32 = arith.constant 0 : i32
    %c0_i32_0 = arith.constant 0 : i32
    %c0_i32_1 = arith.constant 0 : i32
    return %c0_i32, %c0_i32_0 : i32, i32
  }
  func.func @transform_4(%arg0: i32) -> (i32, i32) {
    %c0_i32 = arith.constant 0 : i32
    %c0_i32_0 = arith.constant 0 : i32
    %c0_i32_1 = arith.constant 0 : i32
    return %c0_i32, %c0_i32_0 : i32, i32
  }
  func.func @transform_5(%arg0: i32) -> (i32, i32) {
    %c0_i32 = arith.constant 0 : i32
    %c0_i32_0 = arith.constant 0 : i32
    %c0_i32_1 = arith.constant 0 : i32
    return %c0_i32, %c0_i32_0 : i32, i32
  }
  func.func @transform_6(%arg0: i32) -> (i32, i32) {
    %c0_i32 = arith.constant 0 : i32
    %c0_i32_0 = arith.constant 0 : i32
    %c0_i32_1 = arith.constant 0 : i32
    return %c0_i32, %c0_i32_0 : i32, i32
  }
  func.func @transform_7(%arg0: i32) -> (i32, i32) {
    %c0_i32 = arith.constant 0 : i32
    %c0_i32_0 = arith.constant 0 : i32
    %c0_i32_1 = arith.constant 0 : i32
    return %c0_i32, %c0_i32_0 : i32, i32
  }
  func.func @transform_8(%arg0: i32) -> (i32, i32) {
    %c0_i32 = arith.constant 0 : i32
    %c0_i32_0 = arith.constant 0 : i32
    %c0_i32_1 = arith.constant 0 : i32
    return %c0_i32, %c0_i32_0 : i32, i32
  }
  func.func @transform_9(%arg0: i32) -> (i32, i32) {
    %c0_i32 = arith.constant 0 : i32
    %c0_i32_0 = arith.constant 0 : i32
    %c0_i32_1 = arith.constant 0 : i32
    return %c0_i32, %c0_i32_0 : i32, i32
  }
  func.func @transform_10(%arg0: i32) -> (i32, i32) {
    %c0_i32 = arith.constant 0 : i32
    %c0_i32_0 = arith.constant 0 : i32
    %c0_i32_1 = arith.constant 0 : i32
    return %c0_i32, %c0_i32_0 : i32, i32
  }
  func.func @transform_11(%arg0: i32) -> (i32, i32) {
    %c0_i32 = arith.constant 0 : i32
    %c0_i32_0 = arith.constant 0 : i32
    %c0_i32_1 = arith.constant 0 : i32
    return %c0_i32, %c0_i32_0 : i32, i32
  }
  func.func @transform_12(%arg0: i32) -> (i32, i32) {
    %c0_i32 = arith.constant 0 : i32
    %c0_i32_0 = arith.constant 0 : i32
    %c0_i32_1 = arith.constant 0 : i32
    return %c0_i32, %c0_i32_0 : i32, i32
  }
  func.func @transform_13(%arg0: i32) -> (i32, i32) {
    %c0_i32 = arith.constant 0 : i32
    %c0_i32_0 = arith.constant 0 : i32
    %c0_i32_1 = arith.constant 0 : i32
    return %c0_i32, %c0_i32_0 : i32, i32
  }
  func.func @transform_14(%arg0: i32) -> (i32, i32) {
    %c0_i32 = arith.constant 0 : i32
    %c0_i32_0 = arith.constant 0 : i32
    %c0_i32_1 = arith.constant 0 : i32
    return %c0_i32, %c0_i32_0 : i32, i32
  }
  func.func @transform_15(%arg0: i32) -> (i32, i32) {
    %c0_i32 = arith.constant 0 : i32
    %c0_i32_0 = arith.constant 0 : i32
    return %arg0, %c0_i32 : i32, i32
  }
}

</mosaic_0001>

<llo_original>
// kernel: tpu_custom_call.1
$region0: #{tpu_custom_call.1}
  #allocation0 [shape = 'u32[]', space=smem, size = 0x4, offset = 0x4, fixed_abs, tag = 'smem constant byte address 0x4 - core index']
  #allocation1 [shape = 'u32[72,128]{1,0:T(1,128)}', space=vmem, size = 0x9000, scoped, tag = 'internal scratch']
  %s0 = inlined_call_operand.vmem [shape: bf16[16,32], index: 0, kind: input, shape index: {}]
  %s1 = inlined_call_operand.vmem [shape: bf16[16,8,8], index: 1, kind: input, shape index: {}]
  %s2 = inlined_call_operand.vmem [shape: f32[2,1,8], index: 2, kind: input, shape index: {}]
  %s3 = inlined_call_operand.vmem [shape: bf16[32,96], index: 3, kind: input, shape index: {}]
  %s4 = inlined_call_operand.vmem [shape: f32[1,96], index: 4, kind: input, shape index: {}]
  %s5 = inlined_call_operand.vmem [shape: bf16[32,32], index: 5, kind: input, shape index: {}]
  %s6 = inlined_call_operand.vmem [shape: f32[1,32], index: 6, kind: input, shape index: {}]
  %s7 = inlined_call_operand.vmem [shape: f32[1,32], index: 7, kind: input, shape index: {}]
  %s8 = inlined_call_operand.vmem [shape: f32[1,32], index: 8, kind: input, shape index: {}]
  %s9 = inlined_call_operand.vmem [shape: bf16[32,64], index: 9, kind: input, shape index: {}]
  %s10 = inlined_call_operand.vmem [shape: f32[1,64], index: 10, kind: input, shape index: {}]
  %s11 = inlined_call_operand.vmem [shape: bf16[64,32], index: 11, kind: input, shape index: {}]
  %s12 = inlined_call_operand.vmem [shape: f32[1,32], index: 12, kind: input, shape index: {}]
  %s13 = inlined_call_operand.vmem [shape: f32[1,32], index: 13, kind: input, shape index: {}]
  %s14 = inlined_call_operand.vmem [shape: f32[1,32], index: 14, kind: input, shape index: {}]
  %s15 = inlined_call_operand.hbm [shape: f32[16,32], index: 15, kind: output, shape index: {}]
  %s16 = sld [smem:[#allocation0]]
  $region70: #{tpu_custom_call.1} parent=0
    _
  %s18 = ssub.s32 1, %s16
  %s19 = scalar_select 0, %s18, %s16
  $region1: #{tpu_custom_call.1} parent=0
    #allocation2 [shape = 'u8[8192]{0}', space=vmem, size = 0x2000, scoped, tag = 'output window, operand 0, single buffered']
    #allocation3 [shape = 's32[1]{0}', space=sflag, size = 0x4, scoped, tag = 'scoped memory for tpu_custom_call.1']
    %20 = vsyncpa [#allocation3], 0
    // Predicated region
    $region2: #{tpu_custom_call.1} parent=1 // pred_check
      _
    $region3: #{tpu_custom_call.1} parent=1 // pred_check_branch
      %22 = sbr.rel (0) target = $region5
    $region4: #{tpu_custom_call.1} parent=1 // pred_region
      _
    $region5: #{tpu_custom_call.1} parent=1 // pred_fallthru
      _
    // Predicated region
    $region6: #{tpu_custom_call.1} parent=1 // pred_check
      _
    $region7: #{tpu_custom_call.1} parent=1 // pred_check_branch
      %24 = sbr.rel (0) target = $region9
    $region8: #{tpu_custom_call.1} parent=1 // pred_region
      _
    $region9: #{tpu_custom_call.1} parent=1 // pred_fallthru
      _
    // Predicated region
    $region10: #{tpu_custom_call.1} parent=1 // pred_check
      _
    $region11: #{tpu_custom_call.1} parent=1 // pred_check_branch
      %26 = sbr.rel (0) target = $region13
    $region12: #{tpu_custom_call.1} parent=1 // pred_region
      _
    $region13: #{tpu_custom_call.1} parent=1 // pred_fallthru
      _
    // Predicated region
    $region14: #{tpu_custom_call.1} parent=1 // pred_check
      _
    $region15: #{tpu_custom_call.1} parent=1 // pred_check_branch
      %28 = sbr.rel (0) target = $region17
    $region16: #{tpu_custom_call.1} parent=1 // pred_region
      _
    $region17: #{tpu_custom_call.1} parent=1 // pred_fallthru
      _
    // Predicated region
    $region18: #{tpu_custom_call.1} parent=1 // pred_check
      _
    $region19: #{tpu_custom_call.1} parent=1 // pred_check_branch
      %30 = sbr.rel (0) target = $region21
    $region20: #{tpu_custom_call.1} parent=1 // pred_region
      _
    $region21: #{tpu_custom_call.1} parent=1 // pred_fallthru
      _
    // Predicated region
    $region22: #{tpu_custom_call.1} parent=1 // pred_check
      _
    $region23: #{tpu_custom_call.1} parent=1 // pred_check_branch
      %32 = sbr.rel (0) target = $region25
    $region24: #{tpu_custom_call.1} parent=1 // pred_region
      _
    $region25: #{tpu_custom_call.1} parent=1 // pred_fallthru
      _
    // Predicated region
    $region26: #{tpu_custom_call.1} parent=1 // pred_check
      _
    $region27: #{tpu_custom_call.1} parent=1 // pred_check_branch
      %34 = sbr.rel (0) target = $region29
    $region28: #{tpu_custom_call.1} parent=1 // pred_region
      _
    $region29: #{tpu_custom_call.1} parent=1 // pred_fallthru
      _
    // Predicated region
    $region30: #{tpu_custom_call.1} parent=1 // pred_check
      _
    $region31: #{tpu_custom_call.1} parent=1 // pred_check_branch
      %36 = sbr.rel (0) target = $region33
    $region32: #{tpu_custom_call.1} parent=1 // pred_region
      _
    $region33: #{tpu_custom_call.1} parent=1 // pred_fallthru
      _
    // Predicated region
    $region34: #{tpu_custom_call.1} parent=1 // pred_check
      _
    $region35: #{tpu_custom_call.1} parent=1 // pred_check_branch
      %38 = sbr.rel (0) target = $region37
    $region36: #{tpu_custom_call.1} parent=1 // pred_region
      _
    $region37: #{tpu_custom_call.1} parent=1 // pred_fallthru
      _
    // Predicated region
    $region38: #{tpu_custom_call.1} parent=1 // pred_check
      _
    $region39: #{tpu_custom_call.1} parent=1 // pred_check_branch
      %40 = sbr.rel (0) target = $region41
    $region40: #{tpu_custom_call.1} parent=1 // pred_region
      _
    $region41: #{tpu_custom_call.1} parent=1 // pred_fallthru
      _
    // Predicated region
    $region42: #{tpu_custom_call.1} parent=1 // pred_check
      _
    $region43: #{tpu_custom_call.1} parent=1 // pred_check_branch
      %42 = sbr.rel (0) target = $region45
    $region44: #{tpu_custom_call.1} parent=1 // pred_region
      _
    $region45: #{tpu_custom_call.1} parent=1 // pred_fallthru
      _
    // Predicated region
    $region46: #{tpu_custom_call.1} parent=1 // pred_check
      _
    $region47: #{tpu_custom_call.1} parent=1 // pred_check_branch
      %44 = sbr.rel (0) target = $region49
    $region48: #{tpu_custom_call.1} parent=1 // pred_region
      _
    $region49: #{tpu_custom_call.1} parent=1 // pred_fallthru
      _
    // Predicated region
    $region50: #{tpu_custom_call.1} parent=1 // pred_check
      _
    $region51: #{tpu_custom_call.1} parent=1 // pred_check_branch
      %46 = sbr.rel (0) target = $region53
    $region52: #{tpu_custom_call.1} parent=1 // pred_region
      _
    $region53: #{tpu_custom_call.1} parent=1 // pred_fallthru
      _
    // Predicated region
    $region54: #{tpu_custom_call.1} parent=1 // pred_check
      _
    $region55: #{tpu_custom_call.1} parent=1 // pred_check_branch
      %48 = sbr.rel (0) target = $region57
    $region56: #{tpu_custom_call.1} parent=1 // pred_region
      _
    $region57: #{tpu_custom_call.1} parent=1 // pred_fallthru
      _
    // Predicated region
    $region58: #{tpu_custom_call.1} parent=1 // pred_check
      _
    $region59: #{tpu_custom_call.1} parent=1 // pred_check_branch
      %50 = sbr.rel (0) target = $region61
    $region60: #{tpu_custom_call.1} parent=1 // pred_region
      _
    $region61: #{tpu_custom_call.1} parent=1 // pred_fallthru
      _
    %v52 = vld [vmem:[%s0] sm:$0xf]
    %v53 = vld [vmem:[%s0 + $0x4] sm:$0xf]
    %v54 = vunpack.c.l.bf16 %v52
    %v55 = vunpack.c.l.bf16 %v53
    %v56 = vld [vmem:[%s3] sm:$0xf]
    %v57 = vld [vmem:[%s3 + $0x4] sm:$0xf]
    %v58 = vld [vmem:[%s3 + $0x8] sm:$0xf]
    %v59 = vld [vmem:[%s3 + $0xc] sm:$0xf]
    %v60 = vld [vmem:[%s4] sm:$0x1]
    %v62 = vperm.slane %v60, 0
    %v66 = vunpack.c.l.b16 %v52
    %v67 = vunpack.c.l.b16 %v53
    %v68 = vpack.c.b16 %v67, %v66
    %v73 = vunpack.c.l.b16 %v56
    %v74 = vunpack.c.l.b16 %v57
    %v75 = vunpack.c.l.b16 %v58
    %v76 = vunpack.c.l.b16 %v59
    %v77 = vpack.c.b16 %v74, %v73
    %v78 = vpack.c.b16 %v76, %v75
    %vm81 = vcmask 261120
    %v83 = vsel %vm81, %v68, 0
    %85 = vmatpush.bf16.msra.mxu0 0
    %86 = vmatpush.bf16.msra.mxu0 0
    %87 = vmatpush.bf16.msra.mxu0 0
    %88 = vmatpush.bf16.msra.mxu0 0
    %89 = vmatpush.bf16.msra.mxu0 0
    %90 = vmatpush.bf16.msra.mxu0 0
    %91 = vmatpush.bf16.msra.mxu0 %v78
    %92 = vmatpush.bf16.msra.mxu0 %v77
    %93 = vmatmul.bf16.gmra.mxu0 %v83
    %v94 = vpop.f32.mrf.mxu0
    %v95 = vadd.f32 %v62, %v94
    %v96 = vpop.f32.mrf.mxu0
    %v97 = vadd.f32 %v62, %v96
    %98 = vdwg.mxu0
    %101 = vrot.lane.b32.xlu0 %v95, 120
    %v102 = vpop.permute.xlu0 %101
    %103 = vrot.lane.b32.xlu0 %v97, 120
    %v104 = vpop.permute.xlu0 %103
    %107 = vrot.lane.b32.xlu0 %v95, 112
    %v108 = vpop.permute.xlu0 %107
    %109 = vrot.lane.b32.xlu0 %v97, 112
    %v110 = vpop.permute.xlu0 %109
    %113 = vrot.lane.b32.xlu0 %v95, 104
    %v114 = vpop.permute.xlu0 %113
    %115 = vrot.lane.b32.xlu0 %v97, 104
    %v116 = vpop.permute.xlu0 %115
    %v119 = vpack.c.bf16 %v95, %v95
    %v120 = vpack.c.bf16 %v102, %v102
    %v121 = vpack.c.bf16 %v108, %v108
    %v122 = vpack.c.bf16 %v114, %v114
    %v123 = vpack.c.bf16 %v97, %v97
    %v124 = vpack.c.bf16 %v104, %v104
    %v125 = vpack.c.bf16 %v110, %v110
    %v126 = vpack.c.bf16 %v116, %v116
    %v127 = vrot.slane %v95, 1
    %v128 = vrot.slane %v95, 2
    %v129 = vrot.slane %v95, 3
    %v130 = vrot.slane %v95, 4
    %v131 = vrot.slane %v95, 5
    %v132 = vrot.slane %v95, 6
    %v133 = vrot.slane %v95, 7
    %v134 = vrot.slane %v97, 1
    %v135 = vrot.slane %v97, 2
    %v136 = vrot.slane %v97, 3
    %v137 = vrot.slane %v97, 4
    %v138 = vrot.slane %v97, 5
    %v139 = vrot.slane %v97, 6
    %v140 = vrot.slane %v97, 7
    %v155 = vperm.slane %v95, 0
    %v156 = vperm.slane %v127, 0
    %v157 = vperm.slane %v128, 0
    %v158 = vperm.slane %v129, 0
    %v159 = vperm.slane %v130, 0
    %v160 = vperm.slane %v131, 0
    %v161 = vperm.slane %v132, 0
    %v162 = vperm.slane %v133, 0
    %v163 = vperm.slane %v97, 0
    %v164 = vperm.slane %v134, 0
    %v165 = vperm.slane %v135, 0
    %v166 = vperm.slane %v136, 0
    %v167 = vperm.slane %v137, 0
    %v168 = vperm.slane %v138, 0
    %v169 = vperm.slane %v139, 0
    %v170 = vperm.slane %v140, 0
    %171 = vrot.lane.b32.xlu0 %v155, 120
    %v172 = vpop.permute.xlu0 %171
    %173 = vrot.lane.b32.xlu0 %v156, 120
    %v174 = vpop.permute.xlu0 %173
    %175 = vrot.lane.b32.xlu0 %v157, 120
    %v176 = vpop.permute.xlu0 %175
    %177 = vrot.lane.b32.xlu0 %v158, 120
    %v178 = vpop.permute.xlu0 %177
    %179 = vrot.lane.b32.xlu0 %v159, 120
    %v180 = vpop.permute.xlu0 %179
    %181 = vrot.lane.b32.xlu0 %v160, 120
    %v182 = vpop.permute.xlu0 %181
    %183 = vrot.lane.b32.xlu0 %v161, 120
    %v184 = vpop.permute.xlu0 %183
    %185 = vrot.lane.b32.xlu0 %v162, 120
    %v186 = vpop.permute.xlu0 %185
    %187 = vrot.lane.b32.xlu0 %v163, 120
    %v188 = vpop.permute.xlu0 %187
    %189 = vrot.lane.b32.xlu0 %v164, 120
    %v190 = vpop.permute.xlu0 %189
    %191 = vrot.lane.b32.xlu0 %v165, 120
    %v192 = vpop.permute.xlu0 %191
    %193 = vrot.lane.b32.xlu0 %v166, 120
    %v194 = vpop.permute.xlu0 %193
    %195 = vrot.lane.b32.xlu0 %v167, 120
    %v196 = vpop.permute.xlu0 %195
    %197 = vrot.lane.b32.xlu0 %v168, 120
    %v198 = vpop.permute.xlu0 %197
    %199 = vrot.lane.b32.xlu0 %v169, 120
    %v200 = vpop.permute.xlu0 %199
    %201 = vrot.lane.b32.xlu0 %v170, 120
    %v202 = vpop.permute.xlu0 %201
    %219 = vrot.lane.b32.xlu0 %v155, 112
    %v220 = vpop.permute.xlu0 %219
    %221 = vrot.lane.b32.xlu0 %v156, 112
    %v222 = vpop.permute.xlu0 %221
    %223 = vrot.lane.b32.xlu0 %v157, 112
    %v224 = vpop.permute.xlu0 %223
    %225 = vrot.lane.b32.xlu0 %v158, 112
    %v226 = vpop.permute.xlu0 %225
    %227 = vrot.lane.b32.xlu0 %v159, 112
    %v228 = vpop.permute.xlu0 %227
    %229 = vrot.lane.b32.xlu0 %v160, 112
    %v230 = vpop.permute.xlu0 %229
    %231 = vrot.lane.b32.xlu0 %v161, 112
    %v232 = vpop.permute.xlu0 %231
    %233 = vrot.lane.b32.xlu0 %v162, 112
    %v234 = vpop.permute.xlu0 %233
    %235 = vrot.lane.b32.xlu0 %v163, 112
    %v236 = vpop.permute.xlu0 %235
    %237 = vrot.lane.b32.xlu0 %v164, 112
    %v238 = vpop.permute.xlu0 %237
    %239 = vrot.lane.b32.xlu0 %v165, 112
    %v240 = vpop.permute.xlu0 %239
    %241 = vrot.lane.b32.xlu0 %v166, 112
    %v242 = vpop.permute.xlu0 %241
    %243 = vrot.lane.b32.xlu0 %v167, 112
    %v244 = vpop.permute.xlu0 %243
    %245 = vrot.lane.b32.xlu0 %v168, 112
    %v246 = vpop.permute.xlu0 %245
    %247 = vrot.lane.b32.xlu0 %v169, 112
    %v248 = vpop.permute.xlu0 %247
    %249 = vrot.lane.b32.xlu0 %v170, 112
    %v250 = vpop.permute.xlu0 %249
    %267 = vrot.lane.b32.xlu0 %v155, 104
    %v268 = vpop.permute.xlu0 %267
    %269 = vrot.lane.b32.xlu0 %v156, 104
    %v270 = vpop.permute.xlu0 %269
    %271 = vrot.lane.b32.xlu0 %v157, 104
    %v272 = vpop.permute.xlu0 %271
    %273 = vrot.lane.b32.xlu0 %v158, 104
    %v274 = vpop.permute.xlu0 %273
    %275 = vrot.lane.b32.xlu0 %v159, 104
    %v276 = vpop.permute.xlu0 %275
    %277 = vrot.lane.b32.xlu0 %v160, 104
    %v278 = vpop.permute.xlu0 %277
    %279 = vrot.lane.b32.xlu0 %v161, 104
    %v280 = vpop.permute.xlu0 %279
    %281 = vrot.lane.b32.xlu0 %v162, 104
    %v282 = vpop.permute.xlu0 %281
    %283 = vrot.lane.b32.xlu0 %v163, 104
    %v284 = vpop.permute.xlu0 %283
    %285 = vrot.lane.b32.xlu0 %v164, 104
    %v286 = vpop.permute.xlu0 %285
    %287 = vrot.lane.b32.xlu0 %v165, 104
    %v288 = vpop.permute.xlu0 %287
    %289 = vrot.lane.b32.xlu0 %v166, 104
    %v290 = vpop.permute.xlu0 %289
    %291 = vrot.lane.b32.xlu0 %v167, 104
    %v292 = vpop.permute.xlu0 %291
    %293 = vrot.lane.b32.xlu0 %v168, 104
    %v294 = vpop.permute.xlu0 %293
    %295 = vrot.lane.b32.xlu0 %v169, 104
    %v296 = vpop.permute.xlu0 %295
    %297 = vrot.lane.b32.xlu0 %v170, 104
    %v298 = vpop.permute.xlu0 %297
    %vm315 = vcmask 1040384
    %v316 = vsel %vm315, %v95, %v172
    %v317 = vsel %vm315, %v127, %v174
    %v318 = vsel %vm315, %v128, %v176
    %v319 = vsel %vm315, %v129, %v178
    %v320 = vsel %vm315, %v130, %v180
    %v321 = vsel %vm315, %v131, %v182
    %v322 = vsel %vm315, %v132, %v184
    %v323 = vsel %vm315, %v133, %v186
    %v324 = vsel %vm315, %v97, %v188
    %v325 = vsel %vm315, %v134, %v190
    %v326 = vsel %vm315, %v135, %v192
    %v327 = vsel %vm315, %v136, %v194
    %v328 = vsel %vm315, %v137, %v196
    %v329 = vsel %vm315, %v138, %v198
    %v330 = vsel %vm315, %v139, %v200
    %v331 = vsel %vm315, %v140, %v202
    %vm332 = vcmask 1041408
    %v333 = vsel %vm332, %v316, %v220
    %v334 = vsel %vm332, %v317, %v222
    %v335 = vsel %vm332, %v318, %v224
    %v336 = vsel %vm332, %v319, %v226
    %v337 = vsel %vm332, %v320, %v228
    %v338 = vsel %vm332, %v321, %v230
    %v339 = vsel %vm332, %v322, %v232
    %v340 = vsel %vm332, %v323, %v234
    %v341 = vsel %vm332, %v324, %v236
    %v342 = vsel %vm332, %v325, %v238
    %v343 = vsel %vm332, %v326, %v240
    %v344 = vsel %vm332, %v327, %v242
    %v345 = vsel %vm332, %v328, %v244
    %v346 = vsel %vm332, %v329, %v246
    %v347 = vsel %vm332, %v330, %v248
    %v348 = vsel %vm332, %v331, %v250
    %vm349 = vcmask 1042432
    %v350 = vsel %vm349, %v333, %v268
    %v351 = vsel %vm349, %v334, %v270
    %v352 = vsel %vm349, %v335, %v272
    %v353 = vsel %vm349, %v336, %v274
    %v354 = vsel %vm349, %v337, %v276
    %v355 = vsel %vm349, %v338, %v278
    %v356 = vsel %vm349, %v339, %v280
    %v357 = vsel %vm349, %v340, %v282
    %v358 = vsel %vm349, %v341, %v284
    %v359 = vsel %vm349, %v342, %v286
    %v360 = vsel %vm349, %v343, %v288
    %v361 = vsel %vm349, %v344, %v290
    %v362 = vsel %vm349, %v345, %v292
    %v363 = vsel %vm349, %v346, %v294
    %v364 = vsel %vm349, %v347, %v296
    %v365 = vsel %vm349, %v348, %v298
    %v366 = vpack.c.bf16 %v350, %v350
    %v367 = vpack.c.bf16 %v351, %v351
    %v368 = vpack.c.bf16 %v352, %v352
    %v369 = vpack.c.bf16 %v353, %v353
    %v370 = vpack.c.bf16 %v354, %v354
    %v371 = vpack.c.bf16 %v355, %v355
    %v372 = vpack.c.bf16 %v356, %v356
    %v373 = vpack.c.bf16 %v357, %v357
    %v374 = vpack.c.bf16 %v358, %v358
    %v375 = vpack.c.bf16 %v359, %v359
    %v376 = vpack.c.bf16 %v360, %v360
    %v377 = vpack.c.bf16 %v361, %v361
    %v378 = vpack.c.bf16 %v362, %v362
    %v379 = vpack.c.bf16 %v363, %v363
    %v380 = vpack.c.bf16 %v364, %v364
    %v381 = vpack.c.bf16 %v365, %v365
    %v382 = vld [vmem:[%s1] sm:$0xf]
    %v383 = vld [vmem:[%s1 + $0x4] sm:$0xf]
    %v384 = vld [vmem:[%s1 + $0x8] sm:$0xf]
    %v385 = vld [vmem:[%s1 + $0xc] sm:$0xf]
    %v386 = vld [vmem:[%s1 + $0x10] sm:$0xf]
    %v387 = vld [vmem:[%s1 + $0x14] sm:$0xf]
    %v388 = vld [vmem:[%s1 + $0x18] sm:$0xf]
    %v389 = vld [vmem:[%s1 + $0x1c] sm:$0xf]
    %v390 = vld [vmem:[%s1 + $0x20] sm:$0xf]
    %v391 = vld [vmem:[%s1 + $0x24] sm:$0xf]
    %v392 = vld [vmem:[%s1 + $0x28] sm:$0xf]
    %v393 = vld [vmem:[%s1 + $0x2c] sm:$0xf]
    %v394 = vld [vmem:[%s1 + $0x30] sm:$0xf]
    %v395 = vld [vmem:[%s1 + $0x34] sm:$0xf]
    %v396 = vld [vmem:[%s1 + $0x38] sm:$0xf]
    %v397 = vld [vmem:[%s1 + $0x3c] sm:$0xf]
    %v399 = vunpack.c.l.b16 %v119
    %v400 = vpack.c.b16 %v399, %v399
    %401 = vrot.lane.b32.xlu0 %v400, 96
    %v402 = vpop.permute.xlu0 %401
    %vm403 = vcmask 64512
    %v405 = vsel %vm403, %v119, 0
    %v408 = vsel %vm403, %v402, 0
    %410 = vmatpush.bf16.xpose.msra.mxu0 0
    %411 = vmatpush.bf16.xpose.msra.mxu0 0
    %412 = vmatpush.bf16.xpose.msra.mxu0 0
    %413 = vmatpush.bf16.xpose.msra.mxu0 0
    %414 = vmatpush.bf16.xpose.msra.mxu0 0
    %415 = vmatpush.bf16.xpose.msra.mxu0 0
    %416 = vmatpush.bf16.xpose.msra.mxu0 0
    %417 = vmatpush.bf16.xpose.msra.mxu0 %v408
    %418 = vmatmul.bf16.gmra.mxu0 %v405
    %v419 = vpop.f32.mrf.mxu0
    %v420 = vadd.f32 0.0, %v419
    %v421 = vpop.f32.mrf.mxu0
    %422 = vdwg.mxu0
    %v424 = vunpack.c.l.b16 %v120
    %v425 = vpack.c.b16 %v424, %v424
    %426 = vrot.lane.b32.xlu0 %v425, 96
    %v427 = vpop.permute.xlu0 %426
    %v429 = vsel %vm403, %v120, 0
    %v432 = vsel %vm403, %v427, 0
    %434 = vmatpush.bf16.xpose.msra.mxu0 0
    %435 = vmatpush.bf16.xpose.msra.mxu0 0
    %436 = vmatpush.bf16.xpose.msra.mxu0 0
    %437 = vmatpush.bf16.xpose.msra.mxu0 0
    %438 = vmatpush.bf16.xpose.msra.mxu0 0
    %439 = vmatpush.bf16.xpose.msra.mxu0 0
    %440 = vmatpush.bf16.xpose.msra.mxu0 0
    %441 = vmatpush.bf16.xpose.msra.mxu0 %v432
    %442 = vmatmul.bf16.gmra.mxu0 %v429
    %v443 = vpop.f32.mrf.mxu0
    %v444 = vadd.f32 0.0, %v443
    %v445 = vpop.f32.mrf.mxu0
    %446 = vdwg.mxu0
    %v448 = vunpack.c.l.b16 %v121
    %v449 = vpack.c.b16 %v448, %v448
    %450 = vrot.lane.b32.xlu0 %v449, 96
    %v451 = vpop.permute.xlu0 %450
    %v453 = vsel %vm403, %v121, 0
    %v456 = vsel %vm403, %v451, 0
    %458 = vmatpush.bf16.xpose.msra.mxu0 0
    %459 = vmatpush.bf16.xpose.msra.mxu0 0
    %460 = vmatpush.bf16.xpose.msra.mxu0 0
    %461 = vmatpush.bf16.xpose.msra.mxu0 0
    %462 = vmatpush.bf16.xpose.msra.mxu0 0
    %463 = vmatpush.bf16.xpose.msra.mxu0 0
    %464 = vmatpush.bf16.xpose.msra.mxu0 0
    %465 = vmatpush.bf16.xpose.msra.mxu0 %v456
    %466 = vmatmul.bf16.gmra.mxu0 %v453
    %v467 = vpop.f32.mrf.mxu0
    %v468 = vadd.f32 0.0, %v467
    %v469 = vpop.f32.mrf.mxu0
    %470 = vdwg.mxu0
    %v472 = vunpack.c.l.b16 %v122
    %v473 = vpack.c.b16 %v472, %v472
    %474 = vrot.lane.b32.xlu0 %v473, 96
    %v475 = vpop.permute.xlu0 %474
    %v477 = vsel %vm403, %v122, 0
    %v480 = vsel %vm403, %v475, 0
    %482 = vmatpush.bf16.xpose.msra.mxu0 0
    %483 = vmatpush.bf16.xpose.msra.mxu0 0
    %484 = vmatpush.bf16.xpose.msra.mxu0 0
    %485 = vmatpush.bf16.xpose.msra.mxu0 0
    %486 = vmatpush.bf16.xpose.msra.mxu0 0
    %487 = vmatpush.bf16.xpose.msra.mxu0 0
    %488 = vmatpush.bf16.xpose.msra.mxu0 0
    %489 = vmatpush.bf16.xpose.msra.mxu0 %v480
    %490 = vmatmul.bf16.gmra.mxu0 %v477
    %v491 = vpop.f32.mrf.mxu0
    %v492 = vadd.f32 0.0, %v491
    %v493 = vpop.f32.mrf.mxu0
    %494 = vdwg.mxu0
    %v496 = vunpack.c.l.b16 %v123
    %v497 = vpack.c.b16 %v496, %v496
    %498 = vrot.lane.b32.xlu0 %v497, 96
    %v499 = vpop.permute.xlu0 %498
    %v501 = vsel %vm403, %v123, 0
    %v504 = vsel %vm403, %v499, 0
    %506 = vmatpush.bf16.xpose.msra.mxu0 0
    %507 = vmatpush.bf16.xpose.msra.mxu0 0
    %508 = vmatpush.bf16.xpose.msra.mxu0 0
    %509 = vmatpush.bf16.xpose.msra.mxu0 0
    %510 = vmatpush.bf16.xpose.msra.mxu0 0
    %511 = vmatpush.bf16.xpose.msra.mxu0 0
    %512 = vmatpush.bf16.xpose.msra.mxu0 0
    %513 = vmatpush.bf16.xpose.msra.mxu0 %v504
    %514 = vmatmul.bf16.gmra.mxu0 %v501
    %v515 = vpop.f32.mrf.mxu0
    %v516 = vadd.f32 0.0, %v515
    %v517 = vpop.f32.mrf.mxu0
    %518 = vdwg.mxu0
    %v520 = vunpack.c.l.b16 %v124
    %v521 = vpack.c.b16 %v520, %v520
    %522 = vrot.lane.b32.xlu0 %v521, 96
    %v523 = vpop.permute.xlu0 %522
    %v525 = vsel %vm403, %v124, 0
    %v528 = vsel %vm403, %v523, 0
    %530 = vmatpush.bf16.xpose.msra.mxu0 0
    %531 = vmatpush.bf16.xpose.msra.mxu0 0
    %532 = vmatpush.bf16.xpose.msra.mxu0 0
    %533 = vmatpush.bf16.xpose.msra.mxu0 0
    %534 = vmatpush.bf16.xpose.msra.mxu0 0
    %535 = vmatpush.bf16.xpose.msra.mxu0 0
    %536 = vmatpush.bf16.xpose.msra.mxu0 0
    %537 = vmatpush.bf16.xpose.msra.mxu0 %v528
    %538 = vmatmul.bf16.gmra.mxu0 %v525
    %v539 = vpop.f32.mrf.mxu0
    %v540 = vadd.f32 0.0, %v539
    %v541 = vpop.f32.mrf.mxu0
    %542 = vdwg.mxu0
    %v544 = vunpack.c.l.b16 %v125
    %v545 = vpack.c.b16 %v544, %v544
    %546 = vrot.lane.b32.xlu0 %v545, 96
    %v547 = vpop.permute.xlu0 %546
    %v549 = vsel %vm403, %v125, 0
    %v552 = vsel %vm403, %v547, 0
    %554 = vmatpush.bf16.xpose.msra.mxu0 0
    %555 = vmatpush.bf16.xpose.msra.mxu0 0
    %556 = vmatpush.bf16.xpose.msra.mxu0 0
    %557 = vmatpush.bf16.xpose.msra.mxu0 0
    %558 = vmatpush.bf16.xpose.msra.mxu0 0
    %559 = vmatpush.bf16.xpose.msra.mxu0 0
    %560 = vmatpush.bf16.xpose.msra.mxu0 0
    %561 = vmatpush.bf16.xpose.msra.mxu0 %v552
    %562 = vmatmul.bf16.gmra.mxu0 %v549
    %v563 = vpop.f32.mrf.mxu0
    %v564 = vadd.f32 0.0, %v563
    %v565 = vpop.f32.mrf.mxu0
    %566 = vdwg.mxu0
    %v568 = vunpack.c.l.b16 %v126
    %v569 = vpack.c.b16 %v568, %v568
    %570 = vrot.lane.b32.xlu0 %v569, 96
    %v571 = vpop.permute.xlu0 %570
    %v573 = vsel %vm403, %v126, 0
    %v576 = vsel %vm403, %v571, 0
    %578 = vmatpush.bf16.xpose.msra.mxu0 0
    %579 = vmatpush.bf16.xpose.msra.mxu0 0
    %580 = vmatpush.bf16.xpose.msra.mxu0 0
    %581 = vmatpush.bf16.xpose.msra.mxu0 0
    %582 = vmatpush.bf16.xpose.msra.mxu0 0
    %583 = vmatpush.bf16.xpose.msra.mxu0 0
    %584 = vmatpush.bf16.xpose.msra.mxu0 0
    %585 = vmatpush.bf16.xpose.msra.mxu0 %v576
    %586 = vmatmul.bf16.gmra.mxu0 %v573
    %v587 = vpop.f32.mrf.mxu0
    %v588 = vadd.f32 0.0, %v587
    %v589 = vpop.f32.mrf.mxu0
    %590 = vdwg.mxu0
    %v592 = vsel %vm403, %v366, 0
    %vm594 = vcmask 1043456
    %v596 = vsel %vm594, %v382, 0
    %598 = vmatpush.bf16.msra.mxu0 0
    %599 = vmatpush.bf16.msra.mxu0 0
    %600 = vmatpush.bf16.msra.mxu0 0
    %601 = vmatpush.bf16.msra.mxu0 0
    %602 = vmatpush.bf16.msra.mxu0 0
    %603 = vmatpush.bf16.msra.mxu0 0
    %604 = vmatpush.bf16.msra.mxu0 0
    %605 = vmatpush.bf16.msra.mxu0 %v596
    %606 = vmatmul.bf16.gmra.mxu0 %v592
    %v607 = vpop.f32.mrf.mxu0
    %v608 = vadd.f32 0.0, %v607
    %v609 = vpop.f32.mrf.mxu0
    %610 = vdwg.mxu0
    %v612 = vsel %vm403, %v367, 0
    %v615 = vsel %vm594, %v383, 0
    %617 = vmatpush.bf16.msra.mxu0 0
    %618 = vmatpush.bf16.msra.mxu0 0
    %619 = vmatpush.bf16.msra.mxu0 0
    %620 = vmatpush.bf16.msra.mxu0 0
    %621 = vmatpush.bf16.msra.mxu0 0
    %622 = vmatpush.bf16.msra.mxu0 0
    %623 = vmatpush.bf16.msra.mxu0 0
    %624 = vmatpush.bf16.msra.mxu0 %v615
    %625 = vmatmul.bf16.gmra.mxu0 %v612
    %v626 = vpop.f32.mrf.mxu0
    %v627 = vadd.f32 0.0, %v626
    %v628 = vpop.f32.mrf.mxu0
    %629 = vdwg.mxu0
    %v631 = vsel %vm403, %v368, 0
    %v634 = vsel %vm594, %v384, 0
    %636 = vmatpush.bf16.msra.mxu0 0
    %637 = vmatpush.bf16.msra.mxu0 0
    %638 = vmatpush.bf16.msra.mxu0 0
    %639 = vmatpush.bf16.msra.mxu0 0
    %640 = vmatpush.bf16.msra.mxu0 0
    %641 = vmatpush.bf16.msra.mxu0 0
    %642 = vmatpush.bf16.msra.mxu0 0
    %643 = vmatpush.bf16.msra.mxu0 %v634
    %644 = vmatmul.bf16.gmra.mxu0 %v631
    %v645 = vpop.f32.mrf.mxu0
    %v646 = vadd.f32 0.0, %v645
    %v647 = vpop.f32.mrf.mxu0
    %648 = vdwg.mxu0
    %v650 = vsel %vm403, %v369, 0
    %v653 = vsel %vm594, %v385, 0
    %655 = vmatpush.bf16.msra.mxu0 0
    %656 = vmatpush.bf16.msra.mxu0 0
    %657 = vmatpush.bf16.msra.mxu0 0
    %658 = vmatpush.bf16.msra.mxu0 0
    %659 = vmatpush.bf16.msra.mxu0 0
    %660 = vmatpush.bf16.msra.mxu0 0
    %661 = vmatpush.bf16.msra.mxu0 0
    %662 = vmatpush.bf16.msra.mxu0 %v653
    %663 = vmatmul.bf16.gmra.mxu0 %v650
    %v664 = vpop.f32.mrf.mxu0
    %v665 = vadd.f32 0.0, %v664
    %v666 = vpop.f32.mrf.mxu0
    %667 = vdwg.mxu0
    %v669 = vsel %vm403, %v370, 0
    %v672 = vsel %vm594, %v386, 0
    %674 = vmatpush.bf16.msra.mxu0 0
    %675 = vmatpush.bf16.msra.mxu0 0
    %676 = vmatpush.bf16.msra.mxu0 0
    %677 = vmatpush.bf16.msra.mxu0 0
    %678 = vmatpush.bf16.msra.mxu0 0
    %679 = vmatpush.bf16.msra.mxu0 0
    %680 = vmatpush.bf16.msra.mxu0 0
    %681 = vmatpush.bf16.msra.mxu0 %v672
    %682 = vmatmul.bf16.gmra.mxu0 %v669
    %v683 = vpop.f32.mrf.mxu0
    %v684 = vadd.f32 0.0, %v683
    %v685 = vpop.f32.mrf.mxu0
    %686 = vdwg.mxu0
    %v688 = vsel %vm403, %v371, 0
    %v691 = vsel %vm594, %v387, 0
    %693 = vmatpush.bf16.msra.mxu0 0
    %694 = vmatpush.bf16.msra.mxu0 0
    %695 = vmatpush.bf16.msra.mxu0 0
    %696 = vmatpush.bf16.msra.mxu0 0
    %697 = vmatpush.bf16.msra.mxu0 0
    %698 = vmatpush.bf16.msra.mxu0 0
    %699 = vmatpush.bf16.msra.mxu0 0
    %700 = vmatpush.bf16.msra.mxu0 %v691
    %701 = vmatmul.bf16.gmra.mxu0 %v688
    %v702 = vpop.f32.mrf.mxu0
    %v703 = vadd.f32 0.0, %v702
    %v704 = vpop.f32.mrf.mxu0
    %705 = vdwg.mxu0
    %v707 = vsel %vm403, %v372, 0
    %v710 = vsel %vm594, %v388, 0
    %712 = vmatpush.bf16.msra.mxu0 0
    %713 = vmatpush.bf16.msra.mxu0 0
    %714 = vmatpush.bf16.msra.mxu0 0
    %715 = vmatpush.bf16.msra.mxu0 0
    %716 = vmatpush.bf16.msra.mxu0 0
    %717 = vmatpush.bf16.msra.mxu0 0
    %718 = vmatpush.bf16.msra.mxu0 0
    %719 = vmatpush.bf16.msra.mxu0 %v710
    %720 = vmatmul.bf16.gmra.mxu0 %v707
    %v721 = vpop.f32.mrf.mxu0
    %v722 = vadd.f32 0.0, %v721
    %v723 = vpop.f32.mrf.mxu0
    %724 = vdwg.mxu0
    %v726 = vsel %vm403, %v373, 0
    %v729 = vsel %vm594, %v389, 0
    %731 = vmatpush.bf16.msra.mxu0 0
    %732 = vmatpush.bf16.msra.mxu0 0
    %733 = vmatpush.bf16.msra.mxu0 0
    %734 = vmatpush.bf16.msra.mxu0 0
    %735 = vmatpush.bf16.msra.mxu0 0
    %736 = vmatpush.bf16.msra.mxu0 0
    %737 = vmatpush.bf16.msra.mxu0 0
    %738 = vmatpush.bf16.msra.mxu0 %v729
    %739 = vmatmul.bf16.gmra.mxu0 %v726
    %v740 = vpop.f32.mrf.mxu0
    %v741 = vadd.f32 0.0, %v740
    %v742 = vpop.f32.mrf.mxu0
    %743 = vdwg.mxu0
    %v745 = vsel %vm403, %v374, 0
    %v748 = vsel %vm594, %v390, 0
    %750 = vmatpush.bf16.msra.mxu0 0
    %751 = vmatpush.bf16.msra.mxu0 0
    %752 = vmatpush.bf16.msra.mxu0 0
    %753 = vmatpush.bf16.msra.mxu0 0
    %754 = vmatpush.bf16.msra.mxu0 0
    %755 = vmatpush.bf16.msra.mxu0 0
    %756 = vmatpush.bf16.msra.mxu0 0
    %757 = vmatpush.bf16.msra.mxu0 %v748
    %758 = vmatmul.bf16.gmra.mxu0 %v745
    %v759 = vpop.f32.mrf.mxu0
    %v760 = vadd.f32 0.0, %v759
    %v761 = vpop.f32.mrf.mxu0
    %762 = vdwg.mxu0
    %v764 = vsel %vm403, %v375, 0
    %v767 = vsel %vm594, %v391, 0
    %769 = vmatpush.bf16.msra.mxu0 0
    %770 = vmatpush.bf16.msra.mxu0 0
    %771 = vmatpush.bf16.msra.mxu0 0
    %772 = vmatpush.bf16.msra.mxu0 0
    %773 = vmatpush.bf16.msra.mxu0 0
    %774 = vmatpush.bf16.msra.mxu0 0
    %775 = vmatpush.bf16.msra.mxu0 0
    %776 = vmatpush.bf16.msra.mxu0 %v767
    %777 = vmatmul.bf16.gmra.mxu0 %v764
    %v778 = vpop.f32.mrf.mxu0
    %v779 = vadd.f32 0.0, %v778
    %v780 = vpop.f32.mrf.mxu0
    %781 = vdwg.mxu0
    %v783 = vsel %vm403, %v376, 0
    %v786 = vsel %vm594, %v392, 0
    %788 = vmatpush.bf16.msra.mxu0 0
    %789 = vmatpush.bf16.msra.mxu0 0
    %790 = vmatpush.bf16.msra.mxu0 0
    %791 = vmatpush.bf16.msra.mxu0 0
    %792 = vmatpush.bf16.msra.mxu0 0
    %793 = vmatpush.bf16.msra.mxu0 0
    %794 = vmatpush.bf16.msra.mxu0 0
    %795 = vmatpush.bf16.msra.mxu0 %v786
    %796 = vmatmul.bf16.gmra.mxu0 %v783
    %v797 = vpop.f32.mrf.mxu0
    %v798 = vadd.f32 0.0, %v797
    %v799 = vpop.f32.mrf.mxu0
    %800 = vdwg.mxu0
    %v802 = vsel %vm403, %v377, 0
    %v805 = vsel %vm594, %v393, 0
    %807 = vmatpush.bf16.msra.mxu0 0
    %808 = vmatpush.bf16.msra.mxu0 0
    %809 = vmatpush.bf16.msra.mxu0 0
    %810 = vmatpush.bf16.msra.mxu0 0
    %811 = vmatpush.bf16.msra.mxu0 0
    %812 = vmatpush.bf16.msra.mxu0 0
    %813 = vmatpush.bf16.msra.mxu0 0
    %814 = vmatpush.bf16.msra.mxu0 %v805
    %815 = vmatmul.bf16.gmra.mxu0 %v802
    %v816 = vpop.f32.mrf.mxu0
    %v817 = vadd.f32 0.0, %v816
    %v818 = vpop.f32.mrf.mxu0
    %819 = vdwg.mxu0
    %v821 = vsel %vm403, %v378, 0
    %v824 = vsel %vm594, %v394, 0
    %826 = vmatpush.bf16.msra.mxu0 0
    %827 = vmatpush.bf16.msra.mxu0 0
    %828 = vmatpush.bf16.msra.mxu0 0
    %829 = vmatpush.bf16.msra.mxu0 0
    %830 = vmatpush.bf16.msra.mxu0 0
    %831 = vmatpush.bf16.msra.mxu0 0
    %832 = vmatpush.bf16.msra.mxu0 0
    %833 = vmatpush.bf16.msra.mxu0 %v824
    %834 = vmatmul.bf16.gmra.mxu0 %v821
    %v835 = vpop.f32.mrf.mxu0
    %v836 = vadd.f32 0.0, %v835
    %v837 = vpop.f32.mrf.mxu0
    %838 = vdwg.mxu0
    %v840 = vsel %vm403, %v379, 0
    %v843 = vsel %vm594, %v395, 0
    %845 = vmatpush.bf16.msra.mxu0 0
    %846 = vmatpush.bf16.msra.mxu0 0
    %847 = vmatpush.bf16.msra.mxu0 0
    %848 = vmatpush.bf16.msra.mxu0 0
    %849 = vmatpush.bf16.msra.mxu0 0
    %850 = vmatpush.bf16.msra.mxu0 0
    %851 = vmatpush.bf16.msra.mxu0 0
    %852 = vmatpush.bf16.msra.mxu0 %v843
    %853 = vmatmul.bf16.gmra.mxu0 %v840
    %v854 = vpop.f32.mrf.mxu0
    %v855 = vadd.f32 0.0, %v854
    %v856 = vpop.f32.mrf.mxu0
    %857 = vdwg.mxu0
    %v859 = vsel %vm403, %v380, 0
    %v862 = vsel %vm594, %v396, 0
    %864 = vmatpush.bf16.msra.mxu0 0
    %865 = vmatpush.bf16.msra.mxu0 0
    %866 = vmatpush.bf16.msra.mxu0 0
    %867 = vmatpush.bf16.msra.mxu0 0
    %868 = vmatpush.bf16.msra.mxu0 0
    %869 = vmatpush.bf16.msra.mxu0 0
    %870 = vmatpush.bf16.msra.mxu0 0
    %871 = vmatpush.bf16.msra.mxu0 %v862
    %872 = vmatmul.bf16.gmra.mxu0 %v859
    %v873 = vpop.f32.mrf.mxu0
    %v874 = vadd.f32 0.0, %v873
    %v875 = vpop.f32.mrf.mxu0
    %876 = vdwg.mxu0
    %v878 = vsel %vm403, %v381, 0
    %v881 = vsel %vm594, %v397, 0
    %883 = vmatpush.bf16.msra.mxu0 0
    %884 = vmatpush.bf16.msra.mxu0 0
    %885 = vmatpush.bf16.msra.mxu0 0
    %886 = vmatpush.bf16.msra.mxu0 0
    %887 = vmatpush.bf16.msra.mxu0 0
    %888 = vmatpush.bf16.msra.mxu0 0
    %889 = vmatpush.bf16.msra.mxu0 0
    %890 = vmatpush.bf16.msra.mxu0 %v881
    %891 = vmatmul.bf16.gmra.mxu0 %v878
    %v892 = vpop.f32.mrf.mxu0
    %v893 = vadd.f32 0.0, %v892
    %v894 = vpop.f32.mrf.mxu0
    %895 = vdwg.mxu0
    %v912 = vrot.slane %v608, 1
    %v913 = vrot.slane %v627, 1
    %v914 = vrot.slane %v646, 1
    %v915 = vrot.slane %v665, 1
    %v916 = vrot.slane %v684, 1
    %v917 = vrot.slane %v703, 1
    %v918 = vrot.slane %v722, 1
    %v919 = vrot.slane %v741, 1
    %v920 = vrot.slane %v760, 1
    %v921 = vrot.slane %v779, 1
    %v922 = vrot.slane %v798, 1
    %v923 = vrot.slane %v817, 1
    %v924 = vrot.slane %v836, 1
    %v925 = vrot.slane %v855, 1
    %v926 = vrot.slane %v874, 1
    %v927 = vrot.slane %v893, 1
    %v928 = vrot.slane %v608, 2
    %v929 = vrot.slane %v627, 2
    %v930 = vrot.slane %v646, 2
    %v931 = vrot.slane %v665, 2
    %v932 = vrot.slane %v684, 2
    %v933 = vrot.slane %v703, 2
    %v934 = vrot.slane %v722, 2
    %v935 = vrot.slane %v741, 2
    %v936 = vrot.slane %v760, 2
    %v937 = vrot.slane %v779, 2
    %v938 = vrot.slane %v798, 2
    %v939 = vrot.slane %v817, 2
    %v940 = vrot.slane %v836, 2
    %v941 = vrot.slane %v855, 2
    %v942 = vrot.slane %v874, 2
    %v943 = vrot.slane %v893, 2
    %v944 = vrot.slane %v608, 3
    %v945 = vrot.slane %v627, 3
    %v946 = vrot.slane %v646, 3
    %v947 = vrot.slane %v665, 3
    %v948 = vrot.slane %v684, 3
    %v949 = vrot.slane %v703, 3
    %v950 = vrot.slane %v722, 3
    %v951 = vrot.slane %v741, 3
    %v952 = vrot.slane %v760, 3
    %v953 = vrot.slane %v779, 3
    %v954 = vrot.slane %v798, 3
    %v955 = vrot.slane %v817, 3
    %v956 = vrot.slane %v836, 3
    %v957 = vrot.slane %v855, 3
    %v958 = vrot.slane %v874, 3
    %v959 = vrot.slane %v893, 3
    %v960 = vrot.slane %v627, 7
    %vm961 = vcmask 1041409
    %v962 = vsel %vm961, %v960, %v608
    %v963 = vrot.slane %v646, 6
    %vm964 = vcmask 1042434
    %v965 = vsel %vm964, %v963, %v962
    %v966 = vrot.slane %v665, 5
    %vm967 = vcmask 1043459
    %v968 = vsel %vm967, %v966, %v965
    %v969 = vrot.slane %v684, 4
    %vm970 = vcmask 1044484
    %v971 = vsel %vm970, %v969, %v968
    %vm972 = vcmask 1045509
    %v973 = vsel %vm972, %v949, %v971
    %vm974 = vcmask 1046534
    %v975 = vsel %vm974, %v934, %v973
    %vm976 = vcmask 1047559
    %v977 = vsel %vm976, %v919, %v975
    %v978 = vrot.slane %v913, 7
    %v979 = vsel %vm961, %v978, %v912
    %v980 = vrot.slane %v914, 6
    %v981 = vsel %vm964, %v980, %v979
    %v982 = vrot.slane %v915, 5
    %v983 = vsel %vm967, %v982, %v981
    %v984 = vrot.slane %v916, 4
    %v985 = vsel %vm970, %v984, %v983
    %v986 = vrot.slane %v917, 3
    %v987 = vsel %vm972, %v986, %v985
    %v988 = vrot.slane %v918, 2
    %v989 = vsel %vm974, %v988, %v987
    %v990 = vrot.slane %v919, 1
    %v991 = vsel %vm976, %v990, %v989
    %v992 = vrot.slane %v929, 7
    %v993 = vsel %vm961, %v992, %v928
    %v994 = vrot.slane %v930, 6
    %v995 = vsel %vm964, %v994, %v993
    %v996 = vrot.slane %v931, 5
    %v997 = vsel %vm967, %v996, %v995
    %v998 = vrot.slane %v932, 4
    %v999 = vsel %vm970, %v998, %v997
    %v1000 = vrot.slane %v933, 3
    %v1001 = vsel %vm972, %v1000, %v999
    %v1002 = vrot.slane %v934, 2
    %v1003 = vsel %vm974, %v1002, %v1001
    %v1004 = vrot.slane %v935, 1
    %v1005 = vsel %vm976, %v1004, %v1003
    %v1006 = vrot.slane %v945, 7
    %v1007 = vsel %vm961, %v1006, %v944
    %v1008 = vrot.slane %v946, 6
    %v1009 = vsel %vm964, %v1008, %v1007
    %v1010 = vrot.slane %v947, 5
    %v1011 = vsel %vm967, %v1010, %v1009
    %v1012 = vrot.slane %v948, 4
    %v1013 = vsel %vm970, %v1012, %v1011
    %v1014 = vrot.slane %v949, 3
    %v1015 = vsel %vm972, %v1014, %v1013
    %v1016 = vrot.slane %v950, 2
    %v1017 = vsel %vm974, %v1016, %v1015
    %v1018 = vrot.slane %v951, 1
    %v1019 = vsel %vm976, %v1018, %v1017
    %v1020 = vrot.slane %v779, 7
    %v1021 = vsel %vm961, %v1020, %v760
    %v1022 = vrot.slane %v798, 6
    %v1023 = vsel %vm964, %v1022, %v1021
    %v1024 = vrot.slane %v817, 5
    %v1025 = vsel %vm967, %v1024, %v1023
    %v1026 = vrot.slane %v836, 4
    %v1027 = vsel %vm970, %v1026, %v1025
    %v1028 = vsel %vm972, %v957, %v1027
    %v1029 = vsel %vm974, %v942, %v1028
    %v1030 = vsel %vm976, %v927, %v1029
    %v1031 = vrot.slane %v921, 7
    %v1032 = vsel %vm961, %v1031, %v920
    %v1033 = vrot.slane %v922, 6
    %v1034 = vsel %vm964, %v1033, %v1032
    %v1035 = vrot.slane %v923, 5
    %v1036 = vsel %vm967, %v1035, %v1034
    %v1037 = vrot.slane %v924, 4
    %v1038 = vsel %vm970, %v1037, %v1036
    %v1039 = vrot.slane %v925, 3
    %v1040 = vsel %vm972, %v1039, %v1038
    %v1041 = vrot.slane %v926, 2
    %v1042 = vsel %vm974, %v1041, %v1040
    %v1043 = vrot.slane %v927, 1
    %v1044 = vsel %vm976, %v1043, %v1042
    %v1045 = vrot.slane %v937, 7
    %v1046 = vsel %vm961, %v1045, %v936
    %v1047 = vrot.slane %v938, 6
    %v1048 = vsel %vm964, %v1047, %v1046
    %v1049 = vrot.slane %v939, 5
    %v1050 = vsel %vm967, %v1049, %v1048
    %v1051 = vrot.slane %v940, 4
    %v1052 = vsel %vm970, %v1051, %v1050
    %v1053 = vrot.slane %v941, 3
    %v1054 = vsel %vm972, %v1053, %v1052
    %v1055 = vrot.slane %v942, 2
    %v1056 = vsel %vm974, %v1055, %v1054
    %v1057 = vrot.slane %v943, 1
    %v1058 = vsel %vm976, %v1057, %v1056
    %v1059 = vrot.slane %v953, 7
    %v1060 = vsel %vm961, %v1059, %v952
    %v1061 = vrot.slane %v954, 6
    %v1062 = vsel %vm964, %v1061, %v1060
    %v1063 = vrot.slane %v955, 5
    %v1064 = vsel %vm967, %v1063, %v1062
    %v1065 = vrot.slane %v956, 4
    %v1066 = vsel %vm970, %v1065, %v1064
    %v1067 = vrot.slane %v957, 3
    %v1068 = vsel %vm972, %v1067, %v1066
    %v1069 = vrot.slane %v958, 2
    %v1070 = vsel %vm974, %v1069, %v1068
    %v1071 = vrot.slane %v959, 1
    %v1072 = vsel %vm976, %v1071, %v1070
    %v1081 = vadd.f32 %v420, %v977
    %v1082 = vadd.f32 %v444, %v991
    %v1083 = vadd.f32 %v468, %v1005
    %v1084 = vadd.f32 %v492, %v1019
    %v1085 = vadd.f32 %v516, %v1030
    %v1086 = vadd.f32 %v540, %v1044
    %v1087 = vadd.f32 %v564, %v1058
    %v1088 = vadd.f32 %v588, %v1072
    %v1089 = vld [vmem:[%s2] sm:$0x1]
    %v1090 = vld [vmem:[%s2 + $0x1] sm:$0x1]
    %v1093 = vperm.slane %v1089, 0
    %v1094 = vperm.slane %v1090, 0
    %v1097 = vadd.f32 %v1081, %v1093
    %v1098 = vadd.f32 %v1082, %v1093
    %v1099 = vadd.f32 %v1083, %v1093
    %v1100 = vadd.f32 %v1084, %v1093
    %v1101 = vadd.f32 %v1085, %v1094
    %v1102 = vadd.f32 %v1086, %v1094
    %v1103 = vadd.f32 %v1087, %v1094
    %v1104 = vadd.f32 %v1088, %v1094
    %v1105 = vsel %vm403, %v1097, -inf
    %1106 = vmax.xlane.f32.xlu0 %v1105
    %v1107 = vpop.xlane.xlu0 %1106
    %v1108 = vsel %vm403, %v1098, -inf
    %1109 = vmax.xlane.f32.xlu0 %v1108
    %v1110 = vpop.xlane.xlu0 %1109
    %v1111 = vsel %vm403, %v1099, -inf
    %1112 = vmax.xlane.f32.xlu0 %v1111
    %v1113 = vpop.xlane.xlu0 %1112
    %v1114 = vsel %vm403, %v1100, -inf
    %1115 = vmax.xlane.f32.xlu0 %v1114
    %v1116 = vpop.xlane.xlu0 %1115
    %v1117 = vsel %vm403, %v1101, -inf
    %1118 = vmax.xlane.f32.xlu0 %v1117
    %v1119 = vpop.xlane.xlu0 %1118
    %v1120 = vsel %vm403, %v1102, -inf
    %1121 = vmax.xlane.f32.xlu0 %v1120
    %v1122 = vpop.xlane.xlu0 %1121
    %v1123 = vsel %vm403, %v1103, -inf
    %1124 = vmax.xlane.f32.xlu0 %v1123
    %v1125 = vpop.xlane.xlu0 %1124
    %v1126 = vsel %vm403, %v1104, -inf
    %1127 = vmax.xlane.f32.xlu0 %v1126
    %v1128 = vpop.xlane.xlu0 %1127
    %v1129 = vsub.f32 %v1097, %v1107
    %v1130 = vsub.f32 %v1098, %v1110
    %v1131 = vsub.f32 %v1099, %v1113
    %v1132 = vsub.f32 %v1100, %v1116
    %v1133 = vsub.f32 %v1101, %v1119
    %v1134 = vsub.f32 %v1102, %v1122
    %v1135 = vsub.f32 %v1103, %v1125
    %v1136 = vsub.f32 %v1104, %v1128
    %v1137 = vmul.f32 %v1129, 1.442695
    %v1138 = vpow.pop %v1137
    %v1139 = vmul.f32 %v1130, 1.442695
    %v1140 = vpow.pop %v1139
    %v1141 = vmul.f32 %v1131, 1.442695
    %v1142 = vpow.pop %v1141
    %v1143 = vmul.f32 %v1132, 1.442695
    %v1144 = vpow.pop %v1143
    %v1145 = vmul.f32 %v1133, 1.442695
    %v1146 = vpow.pop %v1145
    %v1147 = vmul.f32 %v1134, 1.442695
    %v1148 = vpow.pop %v1147
    %v1149 = vmul.f32 %v1135, 1.442695
    %v1150 = vpow.pop %v1149
    %v1151 = vmul.f32 %v1136, 1.442695
    %v1152 = vpow.pop %v1151
    %v1153 = vsel %vm403, %v1138, 0.0
    %1154 = vadd.xlane.f32.xlu0 %v1153
    %v1155 = vpop.xlane.xlu0 %1154
    %v1156 = vsel %vm403, %v1140, 0.0
    %1157 = vadd.xlane.f32.xlu0 %v1156
    %v1158 = vpop.xlane.xlu0 %1157
    %v1159 = vsel %vm403, %v1142, 0.0
    %1160 = vadd.xlane.f32.xlu0 %v1159
    %v1161 = vpop.xlane.xlu0 %1160
    %v1162 = vsel %vm403, %v1144, 0.0
    %1163 = vadd.xlane.f32.xlu0 %v1162
    %v1164 = vpop.xlane.xlu0 %1163
    %v1165 = vsel %vm403, %v1146, 0.0
    %1166 = vadd.xlane.f32.xlu0 %v1165
    %v1167 = vpop.xlane.xlu0 %1166
    %v1168 = vsel %vm403, %v1148, 0.0
    %1169 = vadd.xlane.f32.xlu0 %v1168
    %v1170 = vpop.xlane.xlu0 %1169
    %v1171 = vsel %vm403, %v1150, 0.0
    %1172 = vadd.xlane.f32.xlu0 %v1171
    %v1173 = vpop.xlane.xlu0 %1172
    %v1174 = vsel %vm403, %v1152, 0.0
    %1175 = vadd.xlane.f32.xlu0 %v1174
    %v1176 = vpop.xlane.xlu0 %1175
    %v1177 = vrcp.pop %v1155
    %v1178 = vrcp.pop %v1158
    %v1179 = vrcp.pop %v1161
    %v1180 = vrcp.pop %v1164
    %v1181 = vrcp.pop %v1167
    %v1182 = vrcp.pop %v1170
    %v1183 = vrcp.pop %v1173
    %v1184 = vrcp.pop %v1176
    %v1185 = vmul.f32 %v1138, %v1177
    %v1186 = vmul.f32 %v1140, %v1178
    %v1187 = vmul.f32 %v1142, %v1179
    %v1188 = vmul.f32 %v1144, %v1180
    %v1189 = vmul.f32 %v1146, %v1181
    %v1190 = vmul.f32 %v1148, %v1182
    %v1191 = vmul.f32 %v1150, %v1183
    %v1192 = vmul.f32 %v1152, %v1184
    %v1193 = vpack.c.bf16 %v1185, %v1185
    %v1194 = vpack.c.bf16 %v1186, %v1186
    %v1195 = vpack.c.bf16 %v1187, %v1187
    %v1196 = vpack.c.bf16 %v1188, %v1188
    %v1197 = vpack.c.bf16 %v1189, %v1189
    %v1198 = vpack.c.bf16 %v1190, %v1190
    %v1199 = vpack.c.bf16 %v1191, %v1191
    %v1200 = vpack.c.bf16 %v1192, %v1192
    %1201 = vrot.lane.b32.xlu0 %v400, 64
    %v1202 = vpop.permute.xlu0 %1201
    %v1204 = vsel %vm403, %v1193, 0
    %v1207 = vsel %vm594, %v1202, 0
    %1209 = vmatpush.bf16.msra.mxu0 0
    %1210 = vmatpush.bf16.msra.mxu0 0
    %1211 = vmatpush.bf16.msra.mxu0 0
    %1212 = vmatpush.bf16.msra.mxu0 0
    %1213 = vmatpush.bf16.msra.mxu0 0
    %1214 = vmatpush.bf16.msra.mxu0 0
    %1215 = vmatpush.bf16.msra.mxu0 0
    %1216 = vmatpush.bf16.msra.mxu0 %v1207
    %1217 = vmatmul.bf16.gmra.mxu0 %v1204
    %v1218 = vpop.f32.mrf.mxu0
    %v1219 = vadd.f32 0.0, %v1218
    %v1220 = vpop.f32.mrf.mxu0
    %1221 = vdwg.mxu0
    %1222 = vrot.lane.b32.xlu0 %v425, 64
    %v1223 = vpop.permute.xlu0 %1222
    %v1225 = vsel %vm403, %v1194, 0
    %v1228 = vsel %vm594, %v1223, 0
    %1230 = vmatpush.bf16.msra.mxu0 0
    %1231 = vmatpush.bf16.msra.mxu0 0
    %1232 = vmatpush.bf16.msra.mxu0 0
    %1233 = vmatpush.bf16.msra.mxu0 0
    %1234 = vmatpush.bf16.msra.mxu0 0
    %1235 = vmatpush.bf16.msra.mxu0 0
    %1236 = vmatpush.bf16.msra.mxu0 0
    %1237 = vmatpush.bf16.msra.mxu0 %v1228
    %1238 = vmatmul.bf16.gmra.mxu0 %v1225
    %v1239 = vpop.f32.mrf.mxu0
    %v1240 = vadd.f32 0.0, %v1239
    %v1241 = vpop.f32.mrf.mxu0
    %1242 = vdwg.mxu0
    %1243 = vrot.lane.b32.xlu0 %v449, 64
    %v1244 = vpop.permute.xlu0 %1243
    %v1246 = vsel %vm403, %v1195, 0
    %v1249 = vsel %vm594, %v1244, 0
    %1251 = vmatpush.bf16.msra.mxu0 0
    %1252 = vmatpush.bf16.msra.mxu0 0
    %1253 = vmatpush.bf16.msra.mxu0 0
    %1254 = vmatpush.bf16.msra.mxu0 0
    %1255 = vmatpush.bf16.msra.mxu0 0
    %1256 = vmatpush.bf16.msra.mxu0 0
    %1257 = vmatpush.bf16.msra.mxu0 0
    %1258 = vmatpush.bf16.msra.mxu0 %v1249
    %1259 = vmatmul.bf16.gmra.mxu0 %v1246
    %v1260 = vpop.f32.mrf.mxu0
    %v1261 = vadd.f32 0.0, %v1260
    %v1262 = vpop.f32.mrf.mxu0
    %1263 = vdwg.mxu0
    %1264 = vrot.lane.b32.xlu0 %v473, 64
    %v1265 = vpop.permute.xlu0 %1264
    %v1267 = vsel %vm403, %v1196, 0
    %v1270 = vsel %vm594, %v1265, 0
    %1272 = vmatpush.bf16.msra.mxu0 0
    %1273 = vmatpush.bf16.msra.mxu0 0
    %1274 = vmatpush.bf16.msra.mxu0 0
    %1275 = vmatpush.bf16.msra.mxu0 0
    %1276 = vmatpush.bf16.msra.mxu0 0
    %1277 = vmatpush.bf16.msra.mxu0 0
    %1278 = vmatpush.bf16.msra.mxu0 0
    %1279 = vmatpush.bf16.msra.mxu0 %v1270
    %1280 = vmatmul.bf16.gmra.mxu0 %v1267
    %v1281 = vpop.f32.mrf.mxu0
    %v1282 = vadd.f32 0.0, %v1281
    %v1283 = vpop.f32.mrf.mxu0
    %1284 = vdwg.mxu0
    %1285 = vrot.lane.b32.xlu0 %v497, 64
    %v1286 = vpop.permute.xlu0 %1285
    %v1288 = vsel %vm403, %v1197, 0
    %v1291 = vsel %vm594, %v1286, 0
    %1293 = vmatpush.bf16.msra.mxu0 0
    %1294 = vmatpush.bf16.msra.mxu0 0
    %1295 = vmatpush.bf16.msra.mxu0 0
    %1296 = vmatpush.bf16.msra.mxu0 0
    %1297 = vmatpush.bf16.msra.mxu0 0
    %1298 = vmatpush.bf16.msra.mxu0 0
    %1299 = vmatpush.bf16.msra.mxu0 0
    %1300 = vmatpush.bf16.msra.mxu0 %v1291
    %1301 = vmatmul.bf16.gmra.mxu0 %v1288
    %v1302 = vpop.f32.mrf.mxu0
    %v1303 = vadd.f32 0.0, %v1302
    %v1304 = vpop.f32.mrf.mxu0
    %1305 = vdwg.mxu0
    %1306 = vrot.lane.b32.xlu0 %v521, 64
    %v1307 = vpop.permute.xlu0 %1306
    %v1309 = vsel %vm403, %v1198, 0
    %v1312 = vsel %vm594, %v1307, 0
    %1314 = vmatpush.bf16.msra.mxu0 0
    %1315 = vmatpush.bf16.msra.mxu0 0
    %1316 = vmatpush.bf16.msra.mxu0 0
    %1317 = vmatpush.bf16.msra.mxu0 0
    %1318 = vmatpush.bf16.msra.mxu0 0
    %1319 = vmatpush.bf16.msra.mxu0 0
    %1320 = vmatpush.bf16.msra.mxu0 0
    %1321 = vmatpush.bf16.msra.mxu0 %v1312
    %1322 = vmatmul.bf16.gmra.mxu0 %v1309
    %v1323 = vpop.f32.mrf.mxu0
    %v1324 = vadd.f32 0.0, %v1323
    %v1325 = vpop.f32.mrf.mxu0
    %1326 = vdwg.mxu0
    %1327 = vrot.lane.b32.xlu0 %v545, 64
    %v1328 = vpop.permute.xlu0 %1327
    %v1330 = vsel %vm403, %v1199, 0
    %v1333 = vsel %vm594, %v1328, 0
    %1335 = vmatpush.bf16.msra.mxu0 0
    %1336 = vmatpush.bf16.msra.mxu0 0
    %1337 = vmatpush.bf16.msra.mxu0 0
    %1338 = vmatpush.bf16.msra.mxu0 0
    %1339 = vmatpush.bf16.msra.mxu0 0
    %1340 = vmatpush.bf16.msra.mxu0 0
    %1341 = vmatpush.bf16.msra.mxu0 0
    %1342 = vmatpush.bf16.msra.mxu0 %v1333
    %1343 = vmatmul.bf16.gmra.mxu0 %v1330
    %v1344 = vpop.f32.mrf.mxu0
    %v1345 = vadd.f32 0.0, %v1344
    %v1346 = vpop.f32.mrf.mxu0
    %1347 = vdwg.mxu0
    %1348 = vrot.lane.b32.xlu0 %v569, 64
    %v1349 = vpop.permute.xlu0 %1348
    %v1351 = vsel %vm403, %v1200, 0
    %v1354 = vsel %vm594, %v1349, 0
    %1356 = vmatpush.bf16.msra.mxu0 0
    %1357 = vmatpush.bf16.msra.mxu0 0
    %1358 = vmatpush.bf16.msra.mxu0 0
    %1359 = vmatpush.bf16.msra.mxu0 0
    %1360 = vmatpush.bf16.msra.mxu0 0
    %1361 = vmatpush.bf16.msra.mxu0 0
    %1362 = vmatpush.bf16.msra.mxu0 0
    %1363 = vmatpush.bf16.msra.mxu0 %v1354
    %1364 = vmatmul.bf16.gmra.mxu0 %v1351
    %v1365 = vpop.f32.mrf.mxu0
    %v1366 = vadd.f32 0.0, %v1365
    %v1367 = vpop.f32.mrf.mxu0
    %1368 = vdwg.mxu0
    %v1371 = vrot.slane %v1193, 3
    %v1372 = vrot.slane %v1197, 3
    %v1374 = vsel %vm315, %v1193, %v1371
    %v1376 = vsel %vm961, %v1193, %v1371
    %v1378 = vrot.slane %v1376, 1
    %v1379 = vsel %vm964, %v1193, %v1371
    %v1381 = vrot.slane %v1379, 2
    %v1382 = vsel %vm967, %v1193, %v1371
    %v1384 = vrot.slane %v1382, 3
    %v1386 = vsel %vm315, %v1197, %v1372
    %v1388 = vsel %vm961, %v1197, %v1372
    %v1390 = vrot.slane %v1388, 1
    %v1391 = vsel %vm964, %v1197, %v1372
    %v1393 = vrot.slane %v1391, 2
    %v1394 = vsel %vm967, %v1197, %v1372
    %v1396 = vrot.slane %v1394, 3
    %v1397 = vunpack.i.l.s16 %v1374
    %v1398 = vunpack.i.h.s16 %v1374
    %v1399 = vunpack.i.l.s16 %v1378
    %v1400 = vunpack.i.h.s16 %v1378
    %v1401 = vunpack.i.l.s16 %v1381
    %v1402 = vunpack.i.h.s16 %v1381
    %v1403 = vunpack.i.l.s16 %v1384
    %v1404 = vunpack.i.h.s16 %v1384
    %v1405 = vunpack.i.l.s16 %v1386
    %v1406 = vunpack.i.h.s16 %v1386
    %v1407 = vunpack.i.l.s16 %v1390
    %v1408 = vunpack.i.h.s16 %v1390
    %v1409 = vunpack.i.l.s16 %v1393
    %v1410 = vunpack.i.h.s16 %v1393
    %v1411 = vunpack.i.l.s16 %v1396
    %v1412 = vunpack.i.h.s16 %v1396
    %v1415 = vrot.slane %v1194, 3
    %v1416 = vrot.slane %v1198, 3
    %v1418 = vsel %vm315, %v1194, %v1415
    %v1420 = vsel %vm961, %v1194, %v1415
    %v1422 = vrot.slane %v1420, 1
    %v1423 = vsel %vm964, %v1194, %v1415
    %v1425 = vrot.slane %v1423, 2
    %v1426 = vsel %vm967, %v1194, %v1415
    %v1428 = vrot.slane %v1426, 3
    %v1430 = vsel %vm315, %v1198, %v1416
    %v1432 = vsel %vm961, %v1198, %v1416
    %v1434 = vrot.slane %v1432, 1
    %v1435 = vsel %vm964, %v1198, %v1416
    %v1437 = vrot.slane %v1435, 2
    %v1438 = vsel %vm967, %v1198, %v1416
    %v1440 = vrot.slane %v1438, 3
    %v1441 = vunpack.i.l.s16 %v1418
    %v1442 = vunpack.i.h.s16 %v1418
    %v1443 = vunpack.i.l.s16 %v1422
    %v1444 = vunpack.i.h.s16 %v1422
    %v1445 = vunpack.i.l.s16 %v1425
    %v1446 = vunpack.i.h.s16 %v1425
    %v1447 = vunpack.i.l.s16 %v1428
    %v1448 = vunpack.i.h.s16 %v1428
    %v1449 = vunpack.i.l.s16 %v1430
    %v1450 = vunpack.i.h.s16 %v1430
    %v1451 = vunpack.i.l.s16 %v1434
    %v1452 = vunpack.i.h.s16 %v1434
    %v1453 = vunpack.i.l.s16 %v1437
    %v1454 = vunpack.i.h.s16 %v1437
    %v1455 = vunpack.i.l.s16 %v1440
    %v1456 = vunpack.i.h.s16 %v1440
    %v1459 = vrot.slane %v1195, 3
    %v1460 = vrot.slane %v1199, 3
    %v1462 = vsel %vm315, %v1195, %v1459
    %v1464 = vsel %vm961, %v1195, %v1459
    %v1466 = vrot.slane %v1464, 1
    %v1467 = vsel %vm964, %v1195, %v1459
    %v1469 = vrot.slane %v1467, 2
    %v1470 = vsel %vm967, %v1195, %v1459
    %v1472 = vrot.slane %v1470, 3
    %v1474 = vsel %vm315, %v1199, %v1460
    %v1476 = vsel %vm961, %v1199, %v1460
    %v1478 = vrot.slane %v1476, 1
    %v1479 = vsel %vm964, %v1199, %v1460
    %v1481 = vrot.slane %v1479, 2
    %v1482 = vsel %vm967, %v1199, %v1460
    %v1484 = vrot.slane %v1482, 3
    %v1485 = vunpack.i.l.s16 %v1462
    %v1486 = vunpack.i.h.s16 %v1462
    %v1487 = vunpack.i.l.s16 %v1466
    %v1488 = vunpack.i.h.s16 %v1466
    %v1489 = vunpack.i.l.s16 %v1469
    %v1490 = vunpack.i.h.s16 %v1469
    %v1491 = vunpack.i.l.s16 %v1472
    %v1492 = vunpack.i.h.s16 %v1472
    %v1493 = vunpack.i.l.s16 %v1474
    %v1494 = vunpack.i.h.s16 %v1474
    %v1495 = vunpack.i.l.s16 %v1478
    %v1496 = vunpack.i.h.s16 %v1478
    %v1497 = vunpack.i.l.s16 %v1481
    %v1498 = vunpack.i.h.s16 %v1481
    %v1499 = vunpack.i.l.s16 %v1484
    %v1500 = vunpack.i.h.s16 %v1484
    %v1503 = vrot.slane %v1196, 3
    %v1504 = vrot.slane %v1200, 3
    %v1506 = vsel %vm315, %v1196, %v1503
    %v1508 = vsel %vm961, %v1196, %v1503
    %v1510 = vrot.slane %v1508, 1
    %v1511 = vsel %vm964, %v1196, %v1503
    %v1513 = vrot.slane %v1511, 2
    %v1514 = vsel %vm967, %v1196, %v1503
    %v1516 = vrot.slane %v1514, 3
    %v1518 = vsel %vm315, %v1200, %v1504
    %v1520 = vsel %vm961, %v1200, %v1504
    %v1522 = vrot.slane %v1520, 1
    %v1523 = vsel %vm964, %v1200, %v1504
    %v1525 = vrot.slane %v1523, 2
    %v1526 = vsel %vm967, %v1200, %v1504
    %v1528 = vrot.slane %v1526, 3
    %v1529 = vunpack.i.l.s16 %v1506
    %v1530 = vunpack.i.h.s16 %v1506
    %v1531 = vunpack.i.l.s16 %v1510
    %v1532 = vunpack.i.h.s16 %v1510
    %v1533 = vunpack.i.l.s16 %v1513
    %v1534 = vunpack.i.h.s16 %v1513
    %v1535 = vunpack.i.l.s16 %v1516
    %v1536 = vunpack.i.h.s16 %v1516
    %v1537 = vunpack.i.l.s16 %v1518
    %v1538 = vunpack.i.h.s16 %v1518
    %v1539 = vunpack.i.l.s16 %v1522
    %v1540 = vunpack.i.h.s16 %v1522
    %v1541 = vunpack.i.l.s16 %v1525
    %v1542 = vunpack.i.h.s16 %v1525
    %v1543 = vunpack.i.l.s16 %v1528
    %v1544 = vunpack.i.h.s16 %v1528
    %v1545 = vpack.i.b16 %v1397, %v1397
    %v1546 = vpack.i.b16 %v1398, %v1398
    %v1547 = vpack.i.b16 %v1399, %v1399
    %v1548 = vpack.i.b16 %v1400, %v1400
    %v1549 = vpack.i.b16 %v1401, %v1401
    %v1550 = vpack.i.b16 %v1402, %v1402
    %v1551 = vpack.i.b16 %v1403, %v1403
    %v1552 = vpack.i.b16 %v1404, %v1404
    %v1553 = vpack.i.b16 %v1405, %v1405
    %v1554 = vpack.i.b16 %v1406, %v1406
    %v1555 = vpack.i.b16 %v1407, %v1407
    %v1556 = vpack.i.b16 %v1408, %v1408
    %v1557 = vpack.i.b16 %v1409, %v1409
    %v1558 = vpack.i.b16 %v1410, %v1410
    %v1559 = vpack.i.b16 %v1411, %v1411
    %v1560 = vpack.i.b16 %v1412, %v1412
    %v1561 = vperm.slane %v1545, 0
    %v1562 = vperm.slane %v1546, 0
    %v1563 = vperm.slane %v1547, 0
    %v1564 = vperm.slane %v1548, 0
    %v1565 = vperm.slane %v1549, 0
    %v1566 = vperm.slane %v1550, 0
    %v1567 = vperm.slane %v1551, 0
    %v1568 = vperm.slane %v1552, 0
    %v1569 = vperm.slane %v1553, 0
    %v1570 = vperm.slane %v1554, 0
    %v1571 = vperm.slane %v1555, 0
    %v1572 = vperm.slane %v1556, 0
    %v1573 = vperm.slane %v1557, 0
    %v1574 = vperm.slane %v1558, 0
    %v1575 = vperm.slane %v1559, 0
    %v1576 = vperm.slane %v1560, 0
    %v1593 = vpack.i.b16 %v1441, %v1441
    %v1594 = vpack.i.b16 %v1442, %v1442
    %v1595 = vpack.i.b16 %v1443, %v1443
    %v1596 = vpack.i.b16 %v1444, %v1444
    %v1597 = vpack.i.b16 %v1445, %v1445
    %v1598 = vpack.i.b16 %v1446, %v1446
    %v1599 = vpack.i.b16 %v1447, %v1447
    %v1600 = vpack.i.b16 %v1448, %v1448
    %v1601 = vpack.i.b16 %v1449, %v1449
    %v1602 = vpack.i.b16 %v1450, %v1450
    %v1603 = vpack.i.b16 %v1451, %v1451
    %v1604 = vpack.i.b16 %v1452, %v1452
    %v1605 = vpack.i.b16 %v1453, %v1453
    %v1606 = vpack.i.b16 %v1454, %v1454
    %v1607 = vpack.i.b16 %v1455, %v1455
    %v1608 = vpack.i.b16 %v1456, %v1456
    %v1609 = vperm.slane %v1593, 0
    %v1610 = vperm.slane %v1594, 0
    %v1611 = vperm.slane %v1595, 0
    %v1612 = vperm.slane %v1596, 0
    %v1613 = vperm.slane %v1597, 0
    %v1614 = vperm.slane %v1598, 0
    %v1615 = vperm.slane %v1599, 0
    %v1616 = vperm.slane %v1600, 0
    %v1617 = vperm.slane %v1601, 0
    %v1618 = vperm.slane %v1602, 0
    %v1619 = vperm.slane %v1603, 0
    %v1620 = vperm.slane %v1604, 0
    %v1621 = vperm.slane %v1605, 0
    %v1622 = vperm.slane %v1606, 0
    %v1623 = vperm.slane %v1607, 0
    %v1624 = vperm.slane %v1608, 0
    %v1641 = vpack.i.b16 %v1485, %v1485
    %v1642 = vpack.i.b16 %v1486, %v1486
    %v1643 = vpack.i.b16 %v1487, %v1487
    %v1644 = vpack.i.b16 %v1488, %v1488
    %v1645 = vpack.i.b16 %v1489, %v1489
    %v1646 = vpack.i.b16 %v1490, %v1490
    %v1647 = vpack.i.b16 %v1491, %v1491
    %v1648 = vpack.i.b16 %v1492, %v1492
    %v1649 = vpack.i.b16 %v1493, %v1493
    %v1650 = vpack.i.b16 %v1494, %v1494
    %v1651 = vpack.i.b16 %v1495, %v1495
    %v1652 = vpack.i.b16 %v1496, %v1496
    %v1653 = vpack.i.b16 %v1497, %v1497
    %v1654 = vpack.i.b16 %v1498, %v1498
    %v1655 = vpack.i.b16 %v1499, %v1499
    %v1656 = vpack.i.b16 %v1500, %v1500
    %v1657 = vperm.slane %v1641, 0
    %v1658 = vperm.slane %v1642, 0
    %v1659 = vperm.slane %v1643, 0
    %v1660 = vperm.slane %v1644, 0
    %v1661 = vperm.slane %v1645, 0
    %v1662 = vperm.slane %v1646, 0
    %v1663 = vperm.slane %v1647, 0
    %v1664 = vperm.slane %v1648, 0
    %v1665 = vperm.slane %v1649, 0
    %v1666 = vperm.slane %v1650, 0
    %v1667 = vperm.slane %v1651, 0
    %v1668 = vperm.slane %v1652, 0
    %v1669 = vperm.slane %v1653, 0
    %v1670 = vperm.slane %v1654, 0
    %v1671 = vperm.slane %v1655, 0
    %v1672 = vperm.slane %v1656, 0
    %v1673 = vpack.i.b16 %v1529, %v1529
    %v1674 = vpack.i.b16 %v1530, %v1530
    %v1675 = vpack.i.b16 %v1531, %v1531
    %v1676 = vpack.i.b16 %v1532, %v1532
    %v1677 = vpack.i.b16 %v1533, %v1533
    %v1678 = vpack.i.b16 %v1534, %v1534
    %v1679 = vpack.i.b16 %v1535, %v1535
    %v1680 = vpack.i.b16 %v1536, %v1536
    %v1681 = vpack.i.b16 %v1537, %v1537
    %v1682 = vpack.i.b16 %v1538, %v1538
    %v1683 = vpack.i.b16 %v1539, %v1539
    %v1684 = vpack.i.b16 %v1540, %v1540
    %v1685 = vpack.i.b16 %v1541, %v1541
    %v1686 = vpack.i.b16 %v1542, %v1542
    %v1687 = vpack.i.b16 %v1543, %v1543
    %v1688 = vpack.i.b16 %v1544, %v1544
    %v1689 = vperm.slane %v1673, 0
    %v1690 = vperm.slane %v1674, 0
    %v1691 = vperm.slane %v1675, 0
    %v1692 = vperm.slane %v1676, 0
    %v1693 = vperm.slane %v1677, 0
    %v1694 = vperm.slane %v1678, 0
    %v1695 = vperm.slane %v1679, 0
    %v1696 = vperm.slane %v1680, 0
    %v1697 = vperm.slane %v1681, 0
    %v1698 = vperm.slane %v1682, 0
    %v1699 = vperm.slane %v1683, 0
    %v1700 = vperm.slane %v1684, 0
    %v1701 = vperm.slane %v1685, 0
    %v1702 = vperm.slane %v1686, 0
    %v1703 = vperm.slane %v1687, 0
    %v1704 = vperm.slane %v1688, 0
    %vm1721 = vcmask 1040384
    %vm1722 = vsmask.f32 256
    %vm1723 = vmand %vm1721, %vm1722
    %v1724 = vsel %vm1723, %v1561, %v1609
    %v1725 = vsel %vm1723, %v1562, %v1610
    %v1726 = vsel %vm1723, %v1563, %v1611
    %v1727 = vsel %vm1723, %v1564, %v1612
    %v1728 = vsel %vm1723, %v1565, %v1613
    %v1729 = vsel %vm1723, %v1566, %v1614
    %v1730 = vsel %vm1723, %v1567, %v1615
    %v1731 = vsel %vm1723, %v1568, %v1616
    %v1732 = vsel %vm1723, %v1569, %v1617
    %v1733 = vsel %vm1723, %v1570, %v1618
    %v1734 = vsel %vm1723, %v1571, %v1619
    %v1735 = vsel %vm1723, %v1572, %v1620
    %v1736 = vsel %vm1723, %v1573, %v1621
    %v1737 = vsel %vm1723, %v1574, %v1622
    %v1738 = vsel %vm1723, %v1575, %v1623
    %v1739 = vsel %vm1723, %v1576, %v1624
    %v1742 = vsel %vm315, %v1724, %v1657
    %v1746 = vsel %vm315, %v1725, %v1658
    %v1750 = vsel %vm315, %v1726, %v1659
    %v1754 = vsel %vm315, %v1727, %v1660
    %v1758 = vsel %vm315, %v1728, %v1661
    %v1762 = vsel %vm315, %v1729, %v1662
    %v1766 = vsel %vm315, %v1730, %v1663
    %v1770 = vsel %vm315, %v1731, %v1664
    %v1774 = vsel %vm315, %v1732, %v1665
    %v1778 = vsel %vm315, %v1733, %v1666
    %v1782 = vsel %vm315, %v1734, %v1667
    %v1786 = vsel %vm315, %v1735, %v1668
    %v1790 = vsel %vm315, %v1736, %v1669
    %v1794 = vsel %vm315, %v1737, %v1670
    %v1798 = vsel %vm315, %v1738, %v1671
    %v1802 = vsel %vm315, %v1739, %v1672
    %vm1804 = vcmask 1041408
    %vm1805 = vsmask.f32 1280
    %vm1806 = vmand %vm1804, %vm1805
    %v1807 = vsel %vm1806, %v1742, %v1689
    %v1808 = vsel %vm1806, %v1746, %v1690
    %v1809 = vsel %vm1806, %v1750, %v1691
    %v1810 = vsel %vm1806, %v1754, %v1692
    %v1811 = vsel %vm1806, %v1758, %v1693
    %v1812 = vsel %vm1806, %v1762, %v1694
    %v1813 = vsel %vm1806, %v1766, %v1695
    %v1814 = vsel %vm1806, %v1770, %v1696
    %v1815 = vsel %vm1806, %v1774, %v1697
    %v1816 = vsel %vm1806, %v1778, %v1698
    %v1817 = vsel %vm1806, %v1782, %v1699
    %v1818 = vsel %vm1806, %v1786, %v1700
    %v1819 = vsel %vm1806, %v1790, %v1701
    %v1820 = vsel %vm1806, %v1794, %v1702
    %v1821 = vsel %vm1806, %v1798, %v1703
    %v1822 = vsel %vm1806, %v1802, %v1704
    %v1824 = vsel %vm403, %v1807, 0
    %v1826 = vsel %vm403, %v382, 0
    %1828 = vmatpush.bf16.xpose.msra.mxu0 0
    %1829 = vmatpush.bf16.xpose.msra.mxu0 0
    %1830 = vmatpush.bf16.xpose.msra.mxu0 0
    %1831 = vmatpush.bf16.xpose.msra.mxu0 0
    %1832 = vmatpush.bf16.xpose.msra.mxu0 0
    %1833 = vmatpush.bf16.xpose.msra.mxu0 0
    %1834 = vmatpush.bf16.xpose.msra.mxu0 0
    %1835 = vmatpush.bf16.xpose.msra.mxu0 %v1826
    %1836 = vmatmul.bf16.gmra.mxu0 %v1824
    %v1837 = vpop.f32.mrf.mxu0
    %v1838 = vadd.f32 0.0, %v1837
    %v1839 = vpop.f32.mrf.mxu0
    %1840 = vdwg.mxu0
    %v1842 = vsel %vm403, %v1808, 0
    %v1844 = vsel %vm403, %v383, 0
    %1846 = vmatpush.bf16.xpose.msra.mxu0 0
    %1847 = vmatpush.bf16.xpose.msra.mxu0 0
    %1848 = vmatpush.bf16.xpose.msra.mxu0 0
    %1849 = vmatpush.bf16.xpose.msra.mxu0 0
    %1850 = vmatpush.bf16.xpose.msra.mxu0 0
    %1851 = vmatpush.bf16.xpose.msra.mxu0 0
    %1852 = vmatpush.bf16.xpose.msra.mxu0 0
    %1853 = vmatpush.bf16.xpose.msra.mxu0 %v1844
    %1854 = vmatmul.bf16.gmra.mxu0 %v1842
    %v1855 = vpop.f32.mrf.mxu0
    %v1856 = vadd.f32 0.0, %v1855
    %v1857 = vpop.f32.mrf.mxu0
    %1858 = vdwg.mxu0
    %v1860 = vsel %vm403, %v1809, 0
    %v1862 = vsel %vm403, %v384, 0
    %1864 = vmatpush.bf16.xpose.msra.mxu0 0
    %1865 = vmatpush.bf16.xpose.msra.mxu0 0
    %1866 = vmatpush.bf16.xpose.msra.mxu0 0
    %1867 = vmatpush.bf16.xpose.msra.mxu0 0
    %1868 = vmatpush.bf16.xpose.msra.mxu0 0
    %1869 = vmatpush.bf16.xpose.msra.mxu0 0
    %1870 = vmatpush.bf16.xpose.msra.mxu0 0
    %1871 = vmatpush.bf16.xpose.msra.mxu0 %v1862
    %1872 = vmatmul.bf16.gmra.mxu0 %v1860
    %v1873 = vpop.f32.mrf.mxu0
    %v1874 = vadd.f32 0.0, %v1873
    %v1875 = vpop.f32.mrf.mxu0
    %1876 = vdwg.mxu0
    %v1878 = vsel %vm403, %v1810, 0
    %v1880 = vsel %vm403, %v385, 0
    %1882 = vmatpush.bf16.xpose.msra.mxu0 0
    %1883 = vmatpush.bf16.xpose.msra.mxu0 0
    %1884 = vmatpush.bf16.xpose.msra.mxu0 0
    %1885 = vmatpush.bf16.xpose.msra.mxu0 0
    %1886 = vmatpush.bf16.xpose.msra.mxu0 0
    %1887 = vmatpush.bf16.xpose.msra.mxu0 0
    %1888 = vmatpush.bf16.xpose.msra.mxu0 0
    %1889 = vmatpush.bf16.xpose.msra.mxu0 %v1880
    %1890 = vmatmul.bf16.gmra.mxu0 %v1878
    %v1891 = vpop.f32.mrf.mxu0
    %v1892 = vadd.f32 0.0, %v1891
    %v1893 = vpop.f32.mrf.mxu0
    %1894 = vdwg.mxu0
    %v1896 = vsel %vm403, %v1811, 0
    %v1898 = vsel %vm403, %v386, 0
    %1900 = vmatpush.bf16.xpose.msra.mxu0 0
    %1901 = vmatpush.bf16.xpose.msra.mxu0 0
    %1902 = vmatpush.bf16.xpose.msra.mxu0 0
    %1903 = vmatpush.bf16.xpose.msra.mxu0 0
    %1904 = vmatpush.bf16.xpose.msra.mxu0 0
    %1905 = vmatpush.bf16.xpose.msra.mxu0 0
    %1906 = vmatpush.bf16.xpose.msra.mxu0 0
    %1907 = vmatpush.bf16.xpose.msra.mxu0 %v1898
    %1908 = vmatmul.bf16.gmra.mxu0 %v1896
    %v1909 = vpop.f32.mrf.mxu0
    %v1910 = vadd.f32 0.0, %v1909
    %v1911 = vpop.f32.mrf.mxu0
    %1912 = vdwg.mxu0
    %v1914 = vsel %vm403, %v1812, 0
    %v1916 = vsel %vm403, %v387, 0
    %1918 = vmatpush.bf16.xpose.msra.mxu0 0
    %1919 = vmatpush.bf16.xpose.msra.mxu0 0
    %1920 = vmatpush.bf16.xpose.msra.mxu0 0
    %1921 = vmatpush.bf16.xpose.msra.mxu0 0
    %1922 = vmatpush.bf16.xpose.msra.mxu0 0
    %1923 = vmatpush.bf16.xpose.msra.mxu0 0
    %1924 = vmatpush.bf16.xpose.msra.mxu0 0
    %1925 = vmatpush.bf16.xpose.msra.mxu0 %v1916
    %1926 = vmatmul.bf16.gmra.mxu0 %v1914
    %v1927 = vpop.f32.mrf.mxu0
    %v1928 = vadd.f32 0.0, %v1927
    %v1929 = vpop.f32.mrf.mxu0
    %1930 = vdwg.mxu0
    %v1932 = vsel %vm403, %v1813, 0
    %v1934 = vsel %vm403, %v388, 0
    %1936 = vmatpush.bf16.xpose.msra.mxu0 0
    %1937 = vmatpush.bf16.xpose.msra.mxu0 0
    %1938 = vmatpush.bf16.xpose.msra.mxu0 0
    %1939 = vmatpush.bf16.xpose.msra.mxu0 0
    %1940 = vmatpush.bf16.xpose.msra.mxu0 0
    %1941 = vmatpush.bf16.xpose.msra.mxu0 0
    %1942 = vmatpush.bf16.xpose.msra.mxu0 0
    %1943 = vmatpush.bf16.xpose.msra.mxu0 %v1934
    %1944 = vmatmul.bf16.gmra.mxu0 %v1932
    %v1945 = vpop.f32.mrf.mxu0
    %v1946 = vadd.f32 0.0, %v1945
    %v1947 = vpop.f32.mrf.mxu0
    %1948 = vdwg.mxu0
    %v1950 = vsel %vm403, %v1814, 0
    %v1952 = vsel %vm403, %v389, 0
    %1954 = vmatpush.bf16.xpose.msra.mxu0 0
    %1955 = vmatpush.bf16.xpose.msra.mxu0 0
    %1956 = vmatpush.bf16.xpose.msra.mxu0 0
    %1957 = vmatpush.bf16.xpose.msra.mxu0 0
    %1958 = vmatpush.bf16.xpose.msra.mxu0 0
    %1959 = vmatpush.bf16.xpose.msra.mxu0 0
    %1960 = vmatpush.bf16.xpose.msra.mxu0 0
    %1961 = vmatpush.bf16.xpose.msra.mxu0 %v1952
    %1962 = vmatmul.bf16.gmra.mxu0 %v1950
    %v1963 = vpop.f32.mrf.mxu0
    %v1964 = vadd.f32 0.0, %v1963
    %v1965 = vpop.f32.mrf.mxu0
    %1966 = vdwg.mxu0
    %v1968 = vsel %vm403, %v1815, 0
    %v1970 = vsel %vm403, %v390, 0
    %1972 = vmatpush.bf16.xpose.msra.mxu0 0
    %1973 = vmatpush.bf16.xpose.msra.mxu0 0
    %1974 = vmatpush.bf16.xpose.msra.mxu0 0
    %1975 = vmatpush.bf16.xpose.msra.mxu0 0
    %1976 = vmatpush.bf16.xpose.msra.mxu0 0
    %1977 = vmatpush.bf16.xpose.msra.mxu0 0
    %1978 = vmatpush.bf16.xpose.msra.mxu0 0
    %1979 = vmatpush.bf16.xpose.msra.mxu0 %v1970
    %1980 = vmatmul.bf16.gmra.mxu0 %v1968
    %v1981 = vpop.f32.mrf.mxu0
    %v1982 = vadd.f32 0.0, %v1981
    %v1983 = vpop.f32.mrf.mxu0
    %1984 = vdwg.mxu0
    %v1986 = vsel %vm403, %v1816, 0
    %v1988 = vsel %vm403, %v391, 0
    %1990 = vmatpush.bf16.xpose.msra.mxu0 0
    %1991 = vmatpush.bf16.xpose.msra.mxu0 0
    %1992 = vmatpush.bf16.xpose.msra.mxu0 0
    %1993 = vmatpush.bf16.xpose.msra.mxu0 0
    %1994 = vmatpush.bf16.xpose.msra.mxu0 0
    %1995 = vmatpush.bf16.xpose.msra.mxu0 0
    %1996 = vmatpush.bf16.xpose.msra.mxu0 0
    %1997 = vmatpush.bf16.xpose.msra.mxu0 %v1988
    %1998 = vmatmul.bf16.gmra.mxu0 %v1986
    %v1999 = vpop.f32.mrf.mxu0
    %v2000 = vadd.f32 0.0, %v1999
    %v2001 = vpop.f32.mrf.mxu0
    %2002 = vdwg.mxu0
    %v2004 = vsel %vm403, %v1817, 0
    %v2006 = vsel %vm403, %v392, 0
    %2008 = vmatpush.bf16.xpose.msra.mxu0 0
    %2009 = vmatpush.bf16.xpose.msra.mxu0 0
    %2010 = vmatpush.bf16.xpose.msra.mxu0 0
    %2011 = vmatpush.bf16.xpose.msra.mxu0 0
    %2012 = vmatpush.bf16.xpose.msra.mxu0 0
    %2013 = vmatpush.bf16.xpose.msra.mxu0 0
    %2014 = vmatpush.bf16.xpose.msra.mxu0 0
    %2015 = vmatpush.bf16.xpose.msra.mxu0 %v2006
    %2016 = vmatmul.bf16.gmra.mxu0 %v2004
    %v2017 = vpop.f32.mrf.mxu0
    %v2018 = vadd.f32 0.0, %v2017
    %v2019 = vpop.f32.mrf.mxu0
    %2020 = vdwg.mxu0
    %v2022 = vsel %vm403, %v1818, 0
    %v2024 = vsel %vm403, %v393, 0
    %2026 = vmatpush.bf16.xpose.msra.mxu0 0
    %2027 = vmatpush.bf16.xpose.msra.mxu0 0
    %2028 = vmatpush.bf16.xpose.msra.mxu0 0
    %2029 = vmatpush.bf16.xpose.msra.mxu0 0
    %2030 = vmatpush.bf16.xpose.msra.mxu0 0
    %2031 = vmatpush.bf16.xpose.msra.mxu0 0
    %2032 = vmatpush.bf16.xpose.msra.mxu0 0
    %2033 = vmatpush.bf16.xpose.msra.mxu0 %v2024
    %2034 = vmatmul.bf16.gmra.mxu0 %v2022
    %v2035 = vpop.f32.mrf.mxu0
    %v2036 = vadd.f32 0.0, %v2035
    %v2037 = vpop.f32.mrf.mxu0
    %2038 = vdwg.mxu0
    %v2040 = vsel %vm403, %v1819, 0
    %v2042 = vsel %vm403, %v394, 0
    %2044 = vmatpush.bf16.xpose.msra.mxu0 0
    %2045 = vmatpush.bf16.xpose.msra.mxu0 0
    %2046 = vmatpush.bf16.xpose.msra.mxu0 0
    %2047 = vmatpush.bf16.xpose.msra.mxu0 0
    %2048 = vmatpush.bf16.xpose.msra.mxu0 0
    %2049 = vmatpush.bf16.xpose.msra.mxu0 0
    %2050 = vmatpush.bf16.xpose.msra.mxu0 0
    %2051 = vmatpush.bf16.xpose.msra.mxu0 %v2042
    %2052 = vmatmul.bf16.gmra.mxu0 %v2040
    %v2053 = vpop.f32.mrf.mxu0
    %v2054 = vadd.f32 0.0, %v2053
    %v2055 = vpop.f32.mrf.mxu0
    %2056 = vdwg.mxu0
    %v2058 = vsel %vm403, %v1820, 0
    %v2060 = vsel %vm403, %v395, 0
    %2062 = vmatpush.bf16.xpose.msra.mxu0 0
    %2063 = vmatpush.bf16.xpose.msra.mxu0 0
    %2064 = vmatpush.bf16.xpose.msra.mxu0 0
    %2065 = vmatpush.bf16.xpose.msra.mxu0 0
    %2066 = vmatpush.bf16.xpose.msra.mxu0 0
    %2067 = vmatpush.bf16.xpose.msra.mxu0 0
    %2068 = vmatpush.bf16.xpose.msra.mxu0 0
    %2069 = vmatpush.bf16.xpose.msra.mxu0 %v2060
    %2070 = vmatmul.bf16.gmra.mxu0 %v2058
    %v2071 = vpop.f32.mrf.mxu0
    %v2072 = vadd.f32 0.0, %v2071
    %v2073 = vpop.f32.mrf.mxu0
    %2074 = vdwg.mxu0
    %v2076 = vsel %vm403, %v1821, 0
    %v2078 = vsel %vm403, %v396, 0
    %2080 = vmatpush.bf16.xpose.msra.mxu0 0
    %2081 = vmatpush.bf16.xpose.msra.mxu0 0
    %2082 = vmatpush.bf16.xpose.msra.mxu0 0
    %2083 = vmatpush.bf16.xpose.msra.mxu0 0
    %2084 = vmatpush.bf16.xpose.msra.mxu0 0
    %2085 = vmatpush.bf16.xpose.msra.mxu0 0
    %2086 = vmatpush.bf16.xpose.msra.mxu0 0
    %2087 = vmatpush.bf16.xpose.msra.mxu0 %v2078
    %2088 = vmatmul.bf16.gmra.mxu0 %v2076
    %v2089 = vpop.f32.mrf.mxu0
    %v2090 = vadd.f32 0.0, %v2089
    %v2091 = vpop.f32.mrf.mxu0
    %2092 = vdwg.mxu0
    %v2094 = vsel %vm403, %v1822, 0
    %v2096 = vsel %vm403, %v397, 0
    %2098 = vmatpush.bf16.xpose.msra.mxu0 0
    %2099 = vmatpush.bf16.xpose.msra.mxu0 0
    %2100 = vmatpush.bf16.xpose.msra.mxu0 0
    %2101 = vmatpush.bf16.xpose.msra.mxu0 0
    %2102 = vmatpush.bf16.xpose.msra.mxu0 0
    %2103 = vmatpush.bf16.xpose.msra.mxu0 0
    %2104 = vmatpush.bf16.xpose.msra.mxu0 0
    %2105 = vmatpush.bf16.xpose.msra.mxu0 %v2096
    %2106 = vmatmul.bf16.gmra.mxu0 %v2094
    %v2107 = vpop.f32.mrf.mxu0
    %v2108 = vadd.f32 0.0, %v2107
    %v2109 = vpop.f32.mrf.mxu0
    %2110 = vdwg.mxu0
    %v2127 = vrot.slane %v1856, 7
    %v2128 = vsel %vm961, %v2127, %v1838
    %v2129 = vrot.slane %v1874, 6
    %v2130 = vsel %vm964, %v2129, %v2128
    %v2131 = vrot.slane %v1892, 5
    %v2132 = vsel %vm967, %v2131, %v2130
    %v2133 = vrot.slane %v1910, 4
    %v2134 = vsel %vm970, %v2133, %v2132
    %v2135 = vrot.slane %v1928, 3
    %v2136 = vsel %vm972, %v2135, %v2134
    %v2137 = vrot.slane %v1946, 2
    %v2138 = vsel %vm974, %v2137, %v2136
    %v2139 = vrot.slane %v1964, 1
    %v2140 = vsel %vm976, %v2139, %v2138
    %v2141 = vrot.slane %v2000, 7
    %v2142 = vsel %vm961, %v2141, %v1982
    %v2143 = vrot.slane %v2018, 6
    %v2144 = vsel %vm964, %v2143, %v2142
    %v2145 = vrot.slane %v2036, 5
    %v2146 = vsel %vm967, %v2145, %v2144
    %v2147 = vrot.slane %v2054, 4
    %v2148 = vsel %vm970, %v2147, %v2146
    %v2149 = vrot.slane %v2072, 3
    %v2150 = vsel %vm972, %v2149, %v2148
    %v2151 = vrot.slane %v2090, 2
    %v2152 = vsel %vm974, %v2151, %v2150
    %v2153 = vrot.slane %v2108, 1
    %v2154 = vsel %vm976, %v2153, %v2152
    %v2157 = vadd.f32 %v1219, %v2140
    %v2158 = vadd.f32 %v1303, %v2154
    %v2159 = vrot.slane %v1838, 1
    %v2160 = vsel %vm961, %v1856, %v2159
    %v2161 = vrot.slane %v1874, 7
    %v2162 = vsel %vm964, %v2161, %v2160
    %v2163 = vrot.slane %v1892, 6
    %v2164 = vsel %vm967, %v2163, %v2162
    %v2165 = vrot.slane %v1910, 5
    %v2166 = vsel %vm970, %v2165, %v2164
    %v2167 = vrot.slane %v1928, 4
    %v2168 = vsel %vm972, %v2167, %v2166
    %v2169 = vrot.slane %v1946, 3
    %v2170 = vsel %vm974, %v2169, %v2168
    %v2171 = vrot.slane %v1964, 2
    %v2172 = vsel %vm976, %v2171, %v2170
    %v2173 = vrot.slane %v1982, 1
    %v2174 = vsel %vm961, %v2000, %v2173
    %v2175 = vrot.slane %v2018, 7
    %v2176 = vsel %vm964, %v2175, %v2174
    %v2177 = vrot.slane %v2036, 6
    %v2178 = vsel %vm967, %v2177, %v2176
    %v2179 = vrot.slane %v2054, 5
    %v2180 = vsel %vm970, %v2179, %v2178
    %v2181 = vrot.slane %v2072, 4
    %v2182 = vsel %vm972, %v2181, %v2180
    %v2183 = vrot.slane %v2090, 3
    %v2184 = vsel %vm974, %v2183, %v2182
    %v2185 = vrot.slane %v2108, 2
    %v2186 = vsel %vm976, %v2185, %v2184
    %v2189 = vadd.f32 %v1240, %v2172
    %v2190 = vadd.f32 %v1324, %v2186
    %v2191 = vrot.slane %v1838, 2
    %v2192 = vrot.slane %v1856, 1
    %v2193 = vsel %vm961, %v2192, %v2191
    %v2194 = vsel %vm964, %v1874, %v2193
    %v2195 = vrot.slane %v1892, 7
    %v2196 = vsel %vm967, %v2195, %v2194
    %v2197 = vrot.slane %v1910, 6
    %v2198 = vsel %vm970, %v2197, %v2196
    %v2199 = vrot.slane %v1928, 5
    %v2200 = vsel %vm972, %v2199, %v2198
    %v2201 = vrot.slane %v1946, 4
    %v2202 = vsel %vm974, %v2201, %v2200
    %v2203 = vrot.slane %v1964, 3
    %v2204 = vsel %vm976, %v2203, %v2202
    %v2205 = vrot.slane %v1982, 2
    %v2206 = vrot.slane %v2000, 1
    %v2207 = vsel %vm961, %v2206, %v2205
    %v2208 = vsel %vm964, %v2018, %v2207
    %v2209 = vrot.slane %v2036, 7
    %v2210 = vsel %vm967, %v2209, %v2208
    %v2211 = vrot.slane %v2054, 6
    %v2212 = vsel %vm970, %v2211, %v2210
    %v2213 = vrot.slane %v2072, 5
    %v2214 = vsel %vm972, %v2213, %v2212
    %v2215 = vrot.slane %v2090, 4
    %v2216 = vsel %vm974, %v2215, %v2214
    %v2217 = vrot.slane %v2108, 3
    %v2218 = vsel %vm976, %v2217, %v2216
    %v2221 = vadd.f32 %v1261, %v2204
    %v2222 = vadd.f32 %v1345, %v2218
    %v2223 = vrot.slane %v1838, 3
    %v2224 = vrot.slane %v1856, 2
    %v2225 = vsel %vm961, %v2224, %v2223
    %v2226 = vrot.slane %v1874, 1
    %v2227 = vsel %vm964, %v2226, %v2225
    %v2228 = vsel %vm967, %v1892, %v2227
    %v2229 = vrot.slane %v1910, 7
    %v2230 = vsel %vm970, %v2229, %v2228
    %v2231 = vrot.slane %v1928, 6
    %v2232 = vsel %vm972, %v2231, %v2230
    %v2233 = vrot.slane %v1946, 5
    %v2234 = vsel %vm974, %v2233, %v2232
    %v2235 = vrot.slane %v1964, 4
    %v2236 = vsel %vm976, %v2235, %v2234
    %v2237 = vrot.slane %v1982, 3
    %v2238 = vrot.slane %v2000, 2
    %v2239 = vsel %vm961, %v2238, %v2237
    %v2240 = vrot.slane %v2018, 1
    %v2241 = vsel %vm964, %v2240, %v2239
    %v2242 = vsel %vm967, %v2036, %v2241
    %v2243 = vrot.slane %v2054, 7
    %v2244 = vsel %vm970, %v2243, %v2242
    %v2245 = vrot.slane %v2072, 6
    %v2246 = vsel %vm972, %v2245, %v2244
    %v2247 = vrot.slane %v2090, 5
    %v2248 = vsel %vm974, %v2247, %v2246
    %v2249 = vrot.slane %v2108, 4
    %v2250 = vsel %vm976, %v2249, %v2248
    %v2253 = vadd.f32 %v1282, %v2236
    %v2254 = vadd.f32 %v1366, %v2250
    %2257 = vrot.lane.b32.xlu0 %v2189, 8
    %v2258 = vpop.permute.xlu0 %2257
    %2259 = vrot.lane.b32.xlu0 %v2190, 8
    %v2260 = vpop.permute.xlu0 %2259
    %2265 = vrot.lane.b32.xlu0 %v2221, 16
    %v2266 = vpop.permute.xlu0 %2265
    %2267 = vrot.lane.b32.xlu0 %v2222, 16
    %v2268 = vpop.permute.xlu0 %2267
    %2273 = vrot.lane.b32.xlu0 %v2253, 24
    %v2274 = vpop.permute.xlu0 %2273
    %2275 = vrot.lane.b32.xlu0 %v2254, 24
    %v2276 = vpop.permute.xlu0 %2275
    %v2279 = vsel %vm403, %v2157, %v2258
    %v2280 = vsel %vm403, %v2158, %v2260
    %vm2281 = vcmask 130048
    %v2282 = vsel %vm2281, %v2279, %v2266
    %v2283 = vsel %vm2281, %v2280, %v2268
    %vm2284 = vcmask 195584
    %v2285 = vsel %vm2284, %v2282, %v2274
    %v2286 = vsel %vm2284, %v2283, %v2276
    %v2287 = vpack.c.bf16 %v2286, %v2285
    %v2288 = vld [vmem:[%s5] sm:$0xf]
    %v2289 = vld [vmem:[%s5 + $0x4] sm:$0xf]
    %v2290 = vld [vmem:[%s5 + $0x8] sm:$0xf]
    %v2291 = vld [vmem:[%s5 + $0xc] sm:$0xf]
    %v2292 = vld [vmem:[%s6] sm:$0x1]
    %v2294 = vperm.slane %v2292, 0
    %v2300 = vunpack.c.l.b16 %v2288
    %v2301 = vunpack.c.l.b16 %v2289
    %v2302 = vunpack.c.l.b16 %v2290
    %v2303 = vunpack.c.l.b16 %v2291
    %v2304 = vpack.c.b16 %v2301, %v2300
    %v2305 = vpack.c.b16 %v2303, %v2302
    %v2309 = vsel %vm81, %v2287, 0
    %2311 = vmatpush.bf16.msra.mxu0 0
    %2312 = vmatpush.bf16.msra.mxu0 0
    %2313 = vmatpush.bf16.msra.mxu0 0
    %2314 = vmatpush.bf16.msra.mxu0 0
    %2315 = vmatpush.bf16.msra.mxu0 0
    %2316 = vmatpush.bf16.msra.mxu0 0
    %2317 = vmatpush.bf16.msra.mxu0 %v2305
    %2318 = vmatpush.bf16.msra.mxu0 %v2304
    %2319 = vmatmul.bf16.gmra.mxu0 %v2309
    %v2320 = vpop.f32.mrf.mxu0
    %v2321 = vadd.f32 %v2294, %v2320
    %v2322 = vpop.f32.mrf.mxu0
    %v2323 = vadd.f32 %v2294, %v2322
    %2324 = vdwg.mxu0
    %v2325 = vadd.f32 %v2321, %v54
    %v2326 = vadd.f32 %v2323, %v55
    %v2327 = vld [vmem:[%s7] sm:$0x1]
    %v2328 = vld [vmem:[%s8] sm:$0x1]
    %v2329 = vsel %vm81, %v2325, 0.0
    %2330 = vadd.xlane.f32.xlu0 %v2329
    %v2331 = vpop.xlane.xlu0 %2330
    %v2332 = vsel %vm81, %v2326, 0.0
    %2333 = vadd.xlane.f32.xlu0 %v2332
    %v2334 = vpop.xlane.xlu0 %2333
    %v2335 = vrcp.pop 32.0
    %v2336 = vmul.f32 32.0, %v2335
    %v2337 = vsub.f32 1.0, %v2336
    %v2338 = vmul.f32 %v2335, %v2337
    %v2339 = vadd.f32 %v2335, %v2338
    %vm2340 = vweird.f32 %v2335
    %v2341 = vsel %vm2340, %v2335, %v2339
    %v2342 = vmul.f32 %v2331, %v2341
    %v2343 = vmul.f32 %v2334, %v2341
    %v2344 = vsub.f32 %v2325, %v2342
    %v2345 = vsub.f32 %v2326, %v2343
    %v2346 = vmul.f32 %v2344, %v2344
    %v2347 = vmul.f32 %v2345, %v2345
    %v2348 = vsel %vm81, %v2346, 0.0
    %2349 = vadd.xlane.f32.xlu0 %v2348
    %v2350 = vpop.xlane.xlu0 %2349
    %v2351 = vsel %vm81, %v2347, 0.0
    %2352 = vadd.xlane.f32.xlu0 %v2351
    %v2353 = vpop.xlane.xlu0 %2352
    %v2354 = vmul.f32 %v2350, %v2341
    %v2355 = vmul.f32 %v2353, %v2341
    %v2356 = vadd.f32 %v2354, 1e-12
    %v2357 = vadd.f32 %v2355, 1e-12
    %v2358 = vrsqrt.pop %v2356
    %v2359 = vmul.f32 %v2358, %v2356
    %v2360 = vmul.f32 %v2359, %v2358
    %v2361 = vmul.f32 0.5, %v2360
    %v2362 = vsub.f32 1.5, %v2361
    %v2363 = vmul.f32 %v2358, %v2362
    %vm2364 = vweird.f32 %v2356
    %vm2365 = vweird.f32 %v2358
    %vm2366 = vmor %vm2364, %vm2365
    %v2367 = vsel %vm2366, %v2358, %v2363
    %v2368 = vrsqrt.pop %v2357
    %v2369 = vmul.f32 %v2368, %v2357
    %v2370 = vmul.f32 %v2369, %v2368
    %v2371 = vmul.f32 0.5, %v2370
    %v2372 = vsub.f32 1.5, %v2371
    %v2373 = vmul.f32 %v2368, %v2372
    %vm2374 = vweird.f32 %v2357
    %vm2375 = vweird.f32 %v2368
    %vm2376 = vmor %vm2374, %vm2375
    %v2377 = vsel %vm2376, %v2368, %v2373
    %v2378 = vmul.f32 %v2344, %v2367
    %v2379 = vmul.f32 %v2345, %v2377
    %v2381 = vperm.slane %v2327, 0
    %v2383 = vmul.f32 %v2378, %v2381
    %v2384 = vmul.f32 %v2379, %v2381
    %v2386 = vperm.slane %v2328, 0
    %v2388 = vadd.f32 %v2383, %v2386
    %v2389 = vadd.f32 %v2384, %v2386
    %v2390 = vpack.c.bf16 %v2389, %v2388
    %v2391 = vld [vmem:[%s9] sm:$0xf]
    %v2392 = vld [vmem:[%s9 + $0x4] sm:$0xf]
    %v2393 = vld [vmem:[%s9 + $0x8] sm:$0xf]
    %v2394 = vld [vmem:[%s9 + $0xc] sm:$0xf]
    %v2395 = vld [vmem:[%s10] sm:$0x1]
    %v2397 = vperm.slane %v2395, 0
    %v2403 = vunpack.c.l.b16 %v2391
    %v2404 = vunpack.c.l.b16 %v2392
    %v2405 = vunpack.c.l.b16 %v2393
    %v2406 = vunpack.c.l.b16 %v2394
    %v2407 = vpack.c.b16 %v2404, %v2403
    %v2408 = vpack.c.b16 %v2406, %v2405
    %v2412 = vsel %vm81, %v2390, 0
    %2414 = vmatpush.bf16.msra.mxu0 0
    %2415 = vmatpush.bf16.msra.mxu0 0
    %2416 = vmatpush.bf16.msra.mxu0 0
    %2417 = vmatpush.bf16.msra.mxu0 0
    %2418 = vmatpush.bf16.msra.mxu0 0
    %2419 = vmatpush.bf16.msra.mxu0 0
    %2420 = vmatpush.bf16.msra.mxu0 %v2408
    %2421 = vmatpush.bf16.msra.mxu0 %v2407
    %2422 = vmatmul.bf16.gmra.mxu0 %v2412
    %v2423 = vpop.f32.mrf.mxu0
    %v2424 = vadd.f32 %v2397, %v2423
    %v2425 = vpop.f32.mrf.mxu0
    %v2426 = vadd.f32 %v2397, %v2425
    %2427 = vdwg.mxu0
    %v2428 = vmul.f32 %v2424, 0.5
    %v2429 = vmul.f32 %v2426, 0.5
    %v2430 = vmul.f32 %v2424, 0.044715
    %v2431 = vmul.f32 %v2426, 0.044715
    %v2432 = vmul.f32 %v2430, %v2424
    %v2433 = vmul.f32 %v2431, %v2426
    %v2434 = vmul.f32 %v2432, %v2424
    %v2435 = vmul.f32 %v2433, %v2426
    %v2436 = vadd.f32 %v2424, %v2434
    %v2437 = vadd.f32 %v2426, %v2435
    %v2438 = vmul.f32 %v2436, 0.7978846
    %v2439 = vmul.f32 %v2437, 0.7978846
    %v2440 = vtanh.pop %v2438
    %v2441 = vtanh.pop %v2439
    %v2442 = vadd.f32 %v2440, 1.0
    %v2443 = vadd.f32 %v2441, 1.0
    %v2444 = vmul.f32 %v2428, %v2442
    %v2445 = vmul.f32 %v2429, %v2443
    %v2446 = vpack.c.bf16 %v2445, %v2444
    %v2447 = vld [vmem:[%s11] sm:$0xf]
    %v2448 = vld [vmem:[%s11 + $0x4] sm:$0xf]
    %v2449 = vld [vmem:[%s11 + $0x8] sm:$0xf]
    %v2450 = vld [vmem:[%s11 + $0xc] sm:$0xf]
    %v2451 = vld [vmem:[%s11 + $0x10] sm:$0xf]
    %v2452 = vld [vmem:[%s11 + $0x14] sm:$0xf]
    %v2453 = vld [vmem:[%s11 + $0x18] sm:$0xf]
    %v2454 = vld [vmem:[%s11 + $0x1c] sm:$0xf]
    %v2455 = vld [vmem:[%s12] sm:$0x1]
    %v2457 = vperm.slane %v2455, 0
    %v2467 = vunpack.c.l.b16 %v2447
    %v2468 = vunpack.c.l.b16 %v2448
    %v2469 = vunpack.c.l.b16 %v2449
    %v2470 = vunpack.c.l.b16 %v2450
    %v2471 = vunpack.c.l.b16 %v2451
    %v2472 = vunpack.c.l.b16 %v2452
    %v2473 = vunpack.c.l.b16 %v2453
    %v2474 = vunpack.c.l.b16 %v2454
    %v2475 = vpack.c.b16 %v2468, %v2467
    %v2476 = vpack.c.b16 %v2470, %v2469
    %v2477 = vpack.c.b16 %v2472, %v2471
    %v2478 = vpack.c.b16 %v2474, %v2473
    %vm2483 = vcmask 523264
    %v2485 = vsel %vm2483, %v2446, 0
    %2487 = vmatpush.bf16.msra.mxu0 0
    %2488 = vmatpush.bf16.msra.mxu0 0
    %2489 = vmatpush.bf16.msra.mxu0 0
    %2490 = vmatpush.bf16.msra.mxu0 0
    %2491 = vmatpush.bf16.msra.mxu0 %v2478
    %2492 = vmatpush.bf16.msra.mxu0 %v2477
    %2493 = vmatpush.bf16.msra.mxu0 %v2476
    %2494 = vmatpush.bf16.msra.mxu0 %v2475
    %2495 = vmatmul.bf16.gmra.mxu0 %v2485
    %v2496 = vpop.f32.mrf.mxu0
    %v2497 = vadd.f32 %v2457, %v2496
    %v2498 = vpop.f32.mrf.mxu0
    %v2499 = vadd.f32 %v2457, %v2498
    %2500 = vdwg.mxu0
    %v2501 = vadd.f32 %v2497, %v2388
    %v2502 = vadd.f32 %v2499, %v2389
    %v2503 = vld [vmem:[%s13] sm:$0x1]
    %v2504 = vld [vmem:[%s14] sm:$0x1]
    %v2505 = vsel %vm81, %v2501, 0.0
    %2506 = vadd.xlane.f32.xlu0 %v2505
    %v2507 = vpop.xlane.xlu0 %2506
    %v2508 = vsel %vm81, %v2502, 0.0
    %2509 = vadd.xlane.f32.xlu0 %v2508
    %v2510 = vpop.xlane.xlu0 %2509
    %v2511 = vmul.f32 %v2507, %v2341
    %v2512 = vmul.f32 %v2510, %v2341
    %v2513 = vsub.f32 %v2501, %v2511
    %v2514 = vsub.f32 %v2502, %v2512
    %v2515 = vmul.f32 %v2513, %v2513
    %v2516 = vmul.f32 %v2514, %v2514
    %v2517 = vsel %vm81, %v2515, 0.0
    %2518 = vadd.xlane.f32.xlu0 %v2517
    %v2519 = vpop.xlane.xlu0 %2518
    %v2520 = vsel %vm81, %v2516, 0.0
    %2521 = vadd.xlane.f32.xlu0 %v2520
    %v2522 = vpop.xlane.xlu0 %2521
    %v2523 = vmul.f32 %v2519, %v2341
    %v2524 = vmul.f32 %v2522, %v2341
    %v2525 = vadd.f32 %v2523, 1e-12
    %v2526 = vadd.f32 %v2524, 1e-12
    %v2527 = vrsqrt.pop %v2525
    %v2528 = vmul.f32 %v2527, %v2525
    %v2529 = vmul.f32 %v2528, %v2527
    %v2530 = vmul.f32 0.5, %v2529
    %v2531 = vsub.f32 1.5, %v2530
    %v2532 = vmul.f32 %v2527, %v2531
    %vm2533 = vweird.f32 %v2525
    %vm2534 = vweird.f32 %v2527
    %vm2535 = vmor %vm2533, %vm2534
    %v2536 = vsel %vm2535, %v2527, %v2532
    %v2537 = vrsqrt.pop %v2526
    %v2538 = vmul.f32 %v2537, %v2526
    %v2539 = vmul.f32 %v2538, %v2537
    %v2540 = vmul.f32 0.5, %v2539
    %v2541 = vsub.f32 1.5, %v2540
    %v2542 = vmul.f32 %v2537, %v2541
    %vm2543 = vweird.f32 %v2526
    %vm2544 = vweird.f32 %v2537
    %vm2545 = vmor %vm2543, %vm2544
    %v2546 = vsel %vm2545, %v2537, %v2542
    %v2547 = vmul.f32 %v2513, %v2536
    %v2548 = vmul.f32 %v2514, %v2546
    %v2550 = vperm.slane %v2503, 0
    %v2552 = vmul.f32 %v2547, %v2550
    %v2553 = vmul.f32 %v2548, %v2550
    %v2555 = vperm.slane %v2504, 0
    %v2557 = vadd.f32 %v2552, %v2555
    %v2558 = vadd.f32 %v2553, %v2555
    %2559 = vst.msk [vmem:[#allocation2] sm:$0xff] %vm81, %v2557
    %2560 = vst.msk [vmem:[#allocation2 + $0x8] sm:$0xff] %vm81, %v2558
    // Predicated region
    $region62: #{tpu_custom_call.1} parent=1 // pred_check
      _
    $region63: #{tpu_custom_call.1} parent=1 // pred_check_branch
      %2562 = sbr.rel (0) target = $region65
    $region64: #{tpu_custom_call.1} parent=1 // pred_region
      %2564 = vsyncadd [#allocation3], 0
      %s2565 = sshll.u32 [#allocation2], 4
      %s2566 = int_to_ptr.vmem [resolvable:$true] %s2565
      %s2567 = sshll.u32 %s15, 4
      %s2568 = int_to_ptr.hbm [resolvable:$true] %s2567
      %2573 = dma.vmem_to_hbm [thread:$0]  %s2566, 256, %s2568, [#allocation3], 128, 128, 8
    $region65: #{tpu_custom_call.1} parent=1 // pred_fallthru
      _
    // Predicated region
    $region66: #{tpu_custom_call.1} parent=1 // pred_check
      _
    $region67: #{tpu_custom_call.1} parent=1 // pred_check_branch
      %2575 = sbr.rel (0) target = $region69
    $region68: #{tpu_custom_call.1} parent=1 // pred_region
      %2577 = dma.done [#allocation3], 256
    $region69: #{tpu_custom_call.1} parent=1 // pred_fallthru
      _
    %2578 = vsyncpa [#allocation3], 1

</llo_original>
